<compile_context>
chip_gen: v6e
topology: v6e:2x2x1
jax: 0.10.0
libtpu: 0.0.40
codegen_flags: <defaults>
</compile_context>

<pallas_src>
import functools

import jax
import jax.numpy as jnp
from jax.experimental import pallas as pl
from jax.experimental.pallas import tpu as pltpu

VMEM = pltpu.MemorySpace.VMEM
F32 = jnp.float32
BF16 = jnp.bfloat16
LANE = 128   # all feature dims are zero-padded to this lane width


def _onehot(cond):
    """0/1 matrix in bf16 (MXU operand) from a boolean condition."""
    return jnp.where(cond, 1.0, 0.0).astype(BF16)


def _pad_cols(a, width):
    return jnp.pad(a, ((0, 0), (0, width - a.shape[1])))


def _pad_to(a, rows, cols):
    return jnp.pad(a, ((0, rows - a.shape[0]), (0, cols - a.shape[1])))


# ----------------------------------------------------------------------------
# Fused kernel: SpGAT (both layers) + entity/relation updates + DGI branch
# ----------------------------------------------------------------------------
def dean_kernel(idx0r_ref, idx0c_ref, idx1c_ref, idxrc_ref,
                ent_ref, rel_ref,
                we_ref, wr_ref, a2w_ref, oa_ref, wr2_ref, oa2w_ref,
                acat_ref, gcnb_ref, dwt_ref, db_ref, mask_ref,
                o_ent_ref, o_h1_ref, o_sc_ref,
                *, alpha, prelu_w):
    N = ent_ref.shape[0]
    R = rel_ref.shape[0]
    E = idx0r_ref.shape[1]
    Hp = a2w_ref.shape[0]          # lane-padded feature width (128)

    # ---- gather / scatter one-hots built in VMEM from int32 indices ----
    # scatter-by-source matrix S: [N, E]
    S = _onehot(jax.lax.broadcasted_iota(jnp.int32, (N, E), 0) == idx0r_ref[...])
    # fused gather [G_src | G_dst | G_rel]: [E, 2N+R]  (one K-concatenated operand,
    # built with a single iota + OR; index blocks never overlap)
    colE = jax.lax.broadcasted_iota(jnp.int32, (E, 2 * N + R), 1)
    Gcat = _onehot((colE == idx0c_ref[...])
                   | (colE == N + idx1c_ref[...])
                   | (colE == 2 * N + idxrc_ref[...]))

    neg_lrelu = lambda v: -jnp.where(v > 0, v, alpha * v)
    elu = lambda v: jnp.where(v > 0, v, jnp.exp(v) - 1.0)

    # ===== fused same-LHS projections (one wide MXU call per LHS) =====
    p_cat = jnp.dot(ent_ref[...], we_ref[...], preferred_element_type=F32)   # [N, 3*Hp]
    r_cat = jnp.dot(rel_ref[...], wr_ref[...], preferred_element_type=F32)   # [R, 2*Hp]
    p_src, p_dst, ent_up = p_cat[:, :Hp], p_cat[:, Hp:2 * Hp], p_cat[:, 2 * Hp:]
    p_rel, rel1 = r_cat[:, :Hp], r_cat[:, Hp:]          # rel1 == out_relation_1 (padded)

    # ===== GAT layer 1 (all heads fused along the lane axis) =====
    p_all = jnp.concatenate([p_src, p_dst, p_rel], axis=0).astype(BF16)      # [2N+R, Hp]
    edge_m = jnp.dot(Gcat, p_all, preferred_element_type=F32)                # [E, Hp]
    # a2 is pre-folded into a block-diagonal [Hp,Hp] matrix, so pw / edge_e come
    # out already replicated per head across its nhid lanes (no EXP matmul).
    pw = jnp.dot(edge_m.astype(BF16), a2w_ref[...], preferred_element_type=F32)
    edge_e = jnp.exp(neg_lrelu(pw))                                          # [E, Hp]
    w = (edge_e * edge_m).astype(BF16)
    num = jnp.dot(S, w, preferred_element_type=F32)                          # [N, Hp]
    den = jnp.dot(S, edge_e.astype(BF16), preferred_element_type=F32)        # [N, Hp]
    x = elu(num / (den + 1e-12))                                             # [N, Hp]
    # NOTE: dropout (drop_GAT) is identity in eval mode.

    # ===== GAT output layer (single head) =====
    q_cat = jnp.dot(x.astype(BF16), oa_ref[...], preferred_element_type=F32)      # [N, 2*Hp]
    r2_cat = jnp.dot(rel1.astype(BF16), wr2_ref[...], preferred_element_type=F32)  # [R, 2*Hp]
    q_rel, fts1 = r2_cat[:, :Hp], r2_cat[:, Hp:]       # fts1 = rel1 @ gcn_W (DGI, reused below)
    q_all = jnp.concatenate([q_cat[:, :Hp], q_cat[:, Hp:], q_rel], axis=0).astype(BF16)
    edge_m2 = jnp.dot(Gcat, q_all, preferred_element_type=F32)                     # [E, Hp]
    pw2 = jnp.dot(edge_m2.astype(BF16), oa2w_ref[...], preferred_element_type=F32)
    edge_e2 = jnp.exp(neg_lrelu(pw2))
    w2 = (edge_e2 * edge_m2).astype(BF16)
    num2 = jnp.dot(S, w2, preferred_element_type=F32)
    den2 = jnp.dot(S, edge_e2.astype(BF16), preferred_element_type=F32)
    gat = elu(num2 / (den2 + 1e-12))                                                # [N, Hp]

    # ===== entity update + L2 normalize (rsqrt -> EUP) =====
    out = ent_up + mask_ref[...] * gat
    ssq = jnp.sum(out * out, axis=1, keepdims=True)
    o_ent_ref[...] = out * jax.lax.rsqrt(jnp.maximum(ssq, 1e-24))                   # dense store

    # ===== DGI branch: dual GCN (row-stacked adjacencies) + readout + disc =====
    out_cat = jnp.dot(acat_ref[...], fts1.astype(BF16), preferred_element_type=F32)  # [2R, Hp]
    h_cat = out_cat + gcnb_ref[...]
    h_cat = jnp.where(h_cat > 0, h_cat, prelu_w * h_cat)                              # PReLU
    o_h1_ref[...] = h_cat[:R, :]                                                      # dense store

    # c = sigmoid(mean(out_relation_1, axis=0))   (KGAvgReadout + Sigmoid)
    c = jnp.mean(rel1, axis=0, keepdims=True)
    c = 1.0 / (1.0 + jnp.exp(-c))                                                     # [1, Hp]
    # bilinear disc: sc[i] = h[i] @ W_b @ c + b  ==  h[i] . (c @ W_b^T)
    v = jnp.dot(c.astype(BF16), dwt_ref[...], preferred_element_type=F32)             # [1, Hp]
    o_sc_ref[...] = jnp.sum(h_cat * v, axis=1, keepdims=True) + db_ref[...]           # [2R, 1]


# ----------------------------------------------------------------------------
# Model wrapper: host-side parameter folding / lane padding + one pallas_call
# ----------------------------------------------------------------------------
def dean_forward(params, batch_inputs, edge_list, edge_type, rel_adj, *,
                 alpha, nheads, nhid, prelu_w=0.25, perm_key=None):
    if perm_key is None:
        perm_key = jax.random.PRNGKey(1)
    ent = params["entity_embeddings"]
    rel = params["relation_embeddings"]
    N, Din = ent.shape
    R, Drel = rel.shape
    H = nheads * nhid
    n_h = params["gcn_W"].shape[1]
    assert H <= LANE and n_h <= LANE
    Hp = LANE

    bf = lambda t: t.astype(BF16)

    # ---- fold per-head attention params into wide, lane-padded operands ----
    A1 = jnp.concatenate([params[f"att{h}_a"] for h in range(nheads)], axis=1)  # [2Din+Drel, H]
    a_src, a_dst, a_rel = A1[:Din], A1[Din:2 * Din], A1[2 * Din:]
    # same-LHS projections fused:  e @ [a_src | a_dst | W_entities],  r @ [a_rel | W_rel]
    we_cat = jnp.concatenate([_pad_cols(a_src, Hp), _pad_cols(a_dst, Hp),
                              _pad_cols(params["W_entities"], Hp)], axis=1)      # [Din, 3*Hp]
    wr_cat = jnp.concatenate([_pad_cols(a_rel, Hp),
                              _pad_cols(params["W_rel"], Hp)], axis=1)           # [Drel, 2*Hp]

    # per-head a2 folded into a block-diagonal broadcast matrix (replaces the
    # K=nheads EXP matmul with plain lane-wide elementwise math in the kernel)
    a2w = jnp.zeros((Hp, Hp), F32)
    for h in range(nheads):
        blk = jnp.broadcast_to(params[f"att{h}_a2"], (nhid, nhid))
        a2w = a2w.at[h * nhid:(h + 1) * nhid, h * nhid:(h + 1) * nhid].set(blk)

    out_a = params["out_a"]
    oa_src, oa_dst, oa_rel = out_a[:H], out_a[H:2 * H], out_a[2 * H:]
    oa_cat = jnp.concatenate([_pad_to(oa_src, Hp, Hp), _pad_to(oa_dst, Hp, Hp)], axis=1)
    # rel1 has two consumers -> fuse:  rel1 @ [oa_rel | gcn_W]
    wr2_cat = jnp.concatenate([_pad_to(oa_rel, Hp, Hp),
                               _pad_to(params["gcn_W"], Hp, Hp)], axis=1)
    oa2w = _pad_to(jnp.broadcast_to(params["out_a2"], (H, H)), Hp, Hp)

    # DGI: fold the np.random.permutation feature shuffle into the adjacency
    # (adj @ P) host-side and row-stack it with adj so both GCN passes are one
    # MXU call in-kernel.  (Permutation made deterministic via jax.random.)
    perm = jax.random.permutation(perm_key, R)
    adjP = rel_adj @ jnp.eye(R, dtype=rel_adj.dtype)[perm]
    acat = jnp.concatenate([rel_adj, adjP], axis=0)                              # [2R, R]

    gcn_b = _pad_cols(params["gcn_b"], Hp)                                       # [1, Hp]
    dwt = _pad_to(params["disc_W"].T, Hp, Hp)                                    # [Hp, Hp]

    # edge index operands (row / column layouts for the in-kernel iota compares)
    idx0_row = edge_list[0][None, :].astype(jnp.int32)
    idx0_col = edge_list[0][:, None].astype(jnp.int32)
    idx1_col = edge_list[1][:, None].astype(jnp.int32)
    idxr_col = edge_type[:, None].astype(jnp.int32)

    # mask over tail entities in the batch (unique is idempotent under .set)
    mask = jnp.zeros((N,), F32).at[batch_inputs[:, 2]].set(1.0)[:, None]

    inputs = (idx0_row, idx0_col, idx1_col, idxr_col,
              bf(ent), bf(rel),
              bf(we_cat), bf(wr_cat), bf(a2w), bf(oa_cat), bf(wr2_cat), bf(oa2w),
              bf(acat), gcn_b, bf(dwt), params["disc_b"], mask)

    o_ent, o_h1, o_sc = pl.pallas_call(
        functools.partial(dean_kernel, alpha=alpha, prelu_w=prelu_w),
        out_shape=(jax.ShapeDtypeStruct((N, Hp), F32),
                   jax.ShapeDtypeStruct((R, Hp), F32),
                   jax.ShapeDtypeStruct((2 * R, 1), F32)),
        in_specs=[pl.BlockSpec(memory_space=VMEM) for _ in inputs],
        out_specs=(pl.BlockSpec(memory_space=VMEM),
                   pl.BlockSpec(memory_space=VMEM),
                   pl.BlockSpec(memory_space=VMEM)),
    )(*inputs)

    out_entity_1 = o_ent[:, :H]
    h_1 = o_h1[:, :n_h]
    ret = o_sc[:, 0][None, :]                                   # [1, 2R] = cat(sc_1, sc_2)

    # TODO(synk): `self.final_relEmb.data = h_1.data` is a parameter side-effect
    # with no functional-JAX equivalent; h_1 is simply returned instead.
    return out_entity_1, h_1, ret


# ----------------------------------------------------------------------------
# Deterministic synthetic setup
# ----------------------------------------------------------------------------
if __name__ == "__main__":
    key = jax.random.PRNGKey(0)
    keys = jax.random.split(key, 20)

    # small shapes consistent with the module
    N, Din = 16, 32          # num_nodes, entity_in_dim
    R, Drel = 8, 32          # num_relation, relation_dim
    nhid, nheads = 16, 2     # entity_out_dim_1, nheads_GAT_1
    n_h = nhid * nheads      # DGI hidden (must match out_relation_1 feat dim)
    E = 16                   # number of edges
    B = 8                    # batch of triples
    alpha = 0.2

    def init(k, shape):
        return jax.random.normal(k, shape, jnp.float32) * 0.1

    params = {
        "entity_embeddings": init(keys[0], (N, Din)),
        "relation_embeddings": init(keys[1], (R, Drel)),
        "W_entities": init(keys[2], (Din, nhid * nheads)),
        "W_rel": init(keys[3], (Drel, nhid * nheads)),
        "att0_a": init(keys[4], (2 * Din + Drel, nhid)),
        "att0_a2": init(keys[5], (nhid, 1)),
        "att1_a": init(keys[6], (2 * Din + Drel, nhid)),
        "att1_a2": init(keys[7], (nhid, 1)),
        "out_a": init(keys[8], (3 * (nhid * nheads), nhid * nheads)),
        "out_a2": init(keys[9], (nhid * nheads, 1)),
        "gcn_W": init(keys[10], (nhid * nheads, n_h)),
        "gcn_b": jnp.zeros((1, n_h), jnp.float32),
        "disc_W": init(keys[11], (n_h, n_h)),
        "disc_b": jnp.zeros((1, 1), jnp.float32),
    }

    edge_list = jax.random.randint(keys[12], (2, E), 0, N)
    edge_type = jax.random.randint(keys[13], (E,), 0, R)
    batch_inputs = jax.random.randint(keys[14], (B, 3), 0, N)
    rel_adj = (jax.random.uniform(keys[15], (R, R)) > 0.5).astype(jnp.float32)

    out_entity_1, h_1, ret = dean_forward(
        params, batch_inputs, edge_list, edge_type, rel_adj,
        alpha=alpha, nheads=nheads, nhid=nhid)

    jax.block_until_ready((out_entity_1, h_1, ret))
    assert out_entity_1.shape == (N, nhid * nheads)
    assert h_1.shape == (R, n_h)
    assert ret.shape == (1, 2 * R)
    print("KERNEL_OK")
</pallas_src>

<mosaic_0001>
module attributes {stable_mosaic.version = 11 : i64} {
  func.func @dean_kernel(%arg0: memref<1x16xi32, #tpu.memory_space<vmem>>, %arg1: memref<16x1xi32, #tpu.memory_space<vmem>>, %arg2: memref<16x1xi32, #tpu.memory_space<vmem>>, %arg3: memref<16x1xi32, #tpu.memory_space<vmem>>, %arg4: memref<16x32xbf16, #tpu.memory_space<vmem>>, %arg5: memref<8x32xbf16, #tpu.memory_space<vmem>>, %arg6: memref<32x384xbf16, #tpu.memory_space<vmem>>, %arg7: memref<32x256xbf16, #tpu.memory_space<vmem>>, %arg8: memref<128x128xbf16, #tpu.memory_space<vmem>>, %arg9: memref<128x256xbf16, #tpu.memory_space<vmem>>, %arg10: memref<128x256xbf16, #tpu.memory_space<vmem>>, %arg11: memref<128x128xbf16, #tpu.memory_space<vmem>>, %arg12: memref<16x8xbf16, #tpu.memory_space<vmem>>, %arg13: memref<1x128xf32, #tpu.memory_space<vmem>>, %arg14: memref<128x128xbf16, #tpu.memory_space<vmem>>, %arg15: memref<1x1xf32, #tpu.memory_space<vmem>>, %arg16: memref<16x1xf32, #tpu.memory_space<vmem>>, %arg17: memref<16x128xf32, #tpu.memory_space<vmem>>, %arg18: memref<8x128xf32, #tpu.memory_space<vmem>>, %arg19: memref<16x1xf32, #tpu.memory_space<vmem>>) attributes {dimension_semantics = [], scalar_prefetch = 0 : i64, scratch_operands = 0 : i64, tpu.core_type = #tpu.core_type<tc>} {
    %0 = tpu.iota {dimensions = array<i32: 0>} : vector<16x16xi32>
    %c0 = arith.constant 0 : index
    %c0_0 = arith.constant 0 : index
    %1 = vector.load %arg0[%c0, %c0_0] : memref<1x16xi32, #tpu.memory_space<vmem>>, vector<1x16xi32>
    %2 = vector.broadcast %1 : vector<1x16xi32> to vector<16x16xi32>
    %3 = arith.cmpi eq, %0, %2 : vector<16x16xi32>
    %cst = arith.constant 1.000000e+00 : f32
    %cst_1 = arith.constant 0.000000e+00 : f32
    %4 = vector.broadcast %cst : f32 to vector<16x16xf32>
    %5 = vector.broadcast %cst_1 : f32 to vector<16x16xf32>
    %6 = arith.select %3, %4, %5 : vector<16x16xi1>, vector<16x16xf32>
    %7 = arith.truncf %6 : vector<16x16xf32> to vector<16x16xbf16>
    %8 = tpu.iota {dimensions = array<i32: 1>} : vector<16x40xi32>
    %c0_2 = arith.constant 0 : index
    %c0_3 = arith.constant 0 : index
    %9 = vector.load %arg1[%c0_2, %c0_3] : memref<16x1xi32, #tpu.memory_space<vmem>>, vector<16x1xi32>
    %10 = vector.broadcast %9 : vector<16x1xi32> to vector<16x40xi32>
    %11 = arith.cmpi eq, %8, %10 : vector<16x40xi32>
    %c0_4 = arith.constant 0 : index
    %c0_5 = arith.constant 0 : index
    %12 = vector.load %arg2[%c0_4, %c0_5] : memref<16x1xi32, #tpu.memory_space<vmem>>, vector<16x1xi32>
    %c16_i32 = arith.constant 16 : i32
    %13 = vector.broadcast %c16_i32 : i32 to vector<16x1xi32>
    %14 = arith.addi %13, %12 : vector<16x1xi32>
    %15 = vector.broadcast %14 : vector<16x1xi32> to vector<16x40xi32>
    %16 = arith.cmpi eq, %8, %15 : vector<16x40xi32>
    %17 = arith.ori %11, %16 : vector<16x40xi1>
    %c0_6 = arith.constant 0 : index
    %c0_7 = arith.constant 0 : index
    %18 = vector.load %arg3[%c0_6, %c0_7] : memref<16x1xi32, #tpu.memory_space<vmem>>, vector<16x1xi32>
    %c32_i32 = arith.constant 32 : i32
    %19 = vector.broadcast %c32_i32 : i32 to vector<16x1xi32>
    %20 = arith.addi %19, %18 : vector<16x1xi32>
    %21 = vector.broadcast %20 : vector<16x1xi32> to vector<16x40xi32>
    %22 = arith.cmpi eq, %8, %21 : vector<16x40xi32>
    %23 = arith.ori %17, %22 : vector<16x40xi1>
    %cst_8 = arith.constant 1.000000e+00 : f32
    %cst_9 = arith.constant 0.000000e+00 : f32
    %24 = vector.broadcast %cst_8 : f32 to vector<16x40xf32>
    %25 = vector.broadcast %cst_9 : f32 to vector<16x40xf32>
    %26 = arith.select %23, %24, %25 : vector<16x40xi1>, vector<16x40xf32>
    %27 = arith.truncf %26 : vector<16x40xf32> to vector<16x40xbf16>
    %c0_10 = arith.constant 0 : index
    %c0_11 = arith.constant 0 : index
    %28 = vector.load %arg4[%c0_10, %c0_11] : memref<16x32xbf16, #tpu.memory_space<vmem>>, vector<16x32xbf16>
    %c0_12 = arith.constant 0 : index
    %c0_13 = arith.constant 0 : index
    %29 = vector.load %arg6[%c0_12, %c0_13] : memref<32x384xbf16, #tpu.memory_space<vmem>>, vector<32x384xbf16>
    %cst_14 = arith.constant dense<0.000000e+00> : vector<16x384xf32>
    %30 = tpu.matmul %28, %29, %cst_14 {dimension_numbers = #tpu.dot_dimension_numbers<[1], [0], [0], [1], [0, 0, 1, 1], [], []>} : vector<16x32xbf16>, vector<32x384xbf16>, vector<16x384xf32> -> vector<16x384xf32>
    %c0_15 = arith.constant 0 : index
    %c0_16 = arith.constant 0 : index
    %31 = vector.load %arg5[%c0_15, %c0_16] : memref<8x32xbf16, #tpu.memory_space<vmem>>, vector<8x32xbf16>
    %c0_17 = arith.constant 0 : index
    %c0_18 = arith.constant 0 : index
    %32 = vector.load %arg7[%c0_17, %c0_18] : memref<32x256xbf16, #tpu.memory_space<vmem>>, vector<32x256xbf16>
    %cst_19 = arith.constant dense<0.000000e+00> : vector<8x256xf32>
    %33 = tpu.matmul %31, %32, %cst_19 {dimension_numbers = #tpu.dot_dimension_numbers<[1], [0], [0], [1], [0, 0, 1, 1], [], []>} : vector<8x32xbf16>, vector<32x256xbf16>, vector<8x256xf32> -> vector<8x256xf32>
    %34 = vector.extract_strided_slice %30 {offsets = [0, 0], sizes = [16, 128], strides = [1, 1]} : vector<16x384xf32> to vector<16x128xf32>
    %35 = vector.extract_strided_slice %30 {offsets = [0, 128], sizes = [16, 128], strides = [1, 1]} : vector<16x384xf32> to vector<16x128xf32>
    %36 = vector.extract_strided_slice %30 {offsets = [0, 256], sizes = [16, 128], strides = [1, 1]} : vector<16x384xf32> to vector<16x128xf32>
    %37 = vector.extract_strided_slice %33 {offsets = [0, 0], sizes = [8, 128], strides = [1, 1]} : vector<8x256xf32> to vector<8x128xf32>
    %38 = vector.extract_strided_slice %33 {offsets = [0, 128], sizes = [8, 128], strides = [1, 1]} : vector<8x256xf32> to vector<8x128xf32>
    %39 = tpu.concatenate %34, %35, %37 in 0 : vector<16x128xf32>, vector<16x128xf32>, vector<8x128xf32> -> vector<40x128xf32>
    %40 = arith.truncf %39 : vector<40x128xf32> to vector<40x128xbf16>
    %cst_20 = arith.constant dense<0.000000e+00> : vector<16x128xf32>
    %41 = tpu.matmul %27, %40, %cst_20 {dimension_numbers = #tpu.dot_dimension_numbers<[1], [0], [0], [1], [0, 0, 1, 1], [], []>} : vector<16x40xbf16>, vector<40x128xbf16>, vector<16x128xf32> -> vector<16x128xf32>
    %42 = arith.truncf %41 : vector<16x128xf32> to vector<16x128xbf16>
    %c0_21 = arith.constant 0 : index
    %c0_22 = arith.constant 0 : index
    %43 = vector.load %arg8[%c0_21, %c0_22] : memref<128x128xbf16, #tpu.memory_space<vmem>>, vector<128x128xbf16>
    %cst_23 = arith.constant dense<0.000000e+00> : vector<16x128xf32>
    %44 = tpu.matmul %42, %43, %cst_23 {dimension_numbers = #tpu.dot_dimension_numbers<[1], [0], [0], [1], [0, 0, 1, 1], [], []>} : vector<16x128xbf16>, vector<128x128xbf16>, vector<16x128xf32> -> vector<16x128xf32>
    %cst_24 = arith.constant 0.000000e+00 : f32
    %45 = vector.broadcast %cst_24 : f32 to vector<16x128xf32>
    %46 = arith.cmpf ogt, %44, %45 : vector<16x128xf32>
    %cst_25 = arith.constant 2.000000e-01 : f32
    %47 = vector.broadcast %cst_25 : f32 to vector<16x128xf32>
    %48 = arith.mulf %47, %44 : vector<16x128xf32>
    %49 = arith.select %46, %44, %48 : vector<16x128xi1>, vector<16x128xf32>
    %cst_26 = arith.constant 0.000000e+00 : f32
    %50 = vector.broadcast %cst_26 : f32 to vector<16x128xf32>
    %51 = arith.subf %50, %49 : vector<16x128xf32>
    %52 = math.exp %51 : vector<16x128xf32>
    %53 = arith.mulf %52, %41 : vector<16x128xf32>
    %54 = arith.truncf %53 : vector<16x128xf32> to vector<16x128xbf16>
    %cst_27 = arith.constant dense<0.000000e+00> : vector<16x128xf32>
    %55 = tpu.matmul %7, %54, %cst_27 {dimension_numbers = #tpu.dot_dimension_numbers<[1], [0], [0], [1], [0, 0, 1, 1], [], []>} : vector<16x16xbf16>, vector<16x128xbf16>, vector<16x128xf32> -> vector<16x128xf32>
    %56 = arith.truncf %52 : vector<16x128xf32> to vector<16x128xbf16>
    %cst_28 = arith.constant dense<0.000000e+00> : vector<16x128xf32>
    %57 = tpu.matmul %7, %56, %cst_28 {dimension_numbers = #tpu.dot_dimension_numbers<[1], [0], [0], [1], [0, 0, 1, 1], [], []>} : vector<16x16xbf16>, vector<16x128xbf16>, vector<16x128xf32> -> vector<16x128xf32>
    %cst_29 = arith.constant 9.99999996E-13 : f32
    %58 = vector.broadcast %cst_29 : f32 to vector<16x128xf32>
    %59 = arith.addf %57, %58 : vector<16x128xf32>
    %60 = arith.divf %55, %59 : vector<16x128xf32>
    %cst_30 = arith.constant 0.000000e+00 : f32
    %61 = vector.broadcast %cst_30 : f32 to vector<16x128xf32>
    %62 = arith.cmpf ogt, %60, %61 : vector<16x128xf32>
    %63 = math.exp %60 : vector<16x128xf32>
    %cst_31 = arith.constant 1.000000e+00 : f32
    %64 = vector.broadcast %cst_31 : f32 to vector<16x128xf32>
    %65 = arith.subf %63, %64 : vector<16x128xf32>
    %66 = arith.select %62, %60, %65 : vector<16x128xi1>, vector<16x128xf32>
    %67 = arith.truncf %66 : vector<16x128xf32> to vector<16x128xbf16>
    %c0_32 = arith.constant 0 : index
    %c0_33 = arith.constant 0 : index
    %68 = vector.load %arg9[%c0_32, %c0_33] : memref<128x256xbf16, #tpu.memory_space<vmem>>, vector<128x256xbf16>
    %cst_34 = arith.constant dense<0.000000e+00> : vector<16x256xf32>
    %69 = tpu.matmul %67, %68, %cst_34 {dimension_numbers = #tpu.dot_dimension_numbers<[1], [0], [0], [1], [0, 0, 1, 1], [], []>} : vector<16x128xbf16>, vector<128x256xbf16>, vector<16x256xf32> -> vector<16x256xf32>
    %70 = arith.truncf %38 : vector<8x128xf32> to vector<8x128xbf16>
    %c0_35 = arith.constant 0 : index
    %c0_36 = arith.constant 0 : index
    %71 = vector.load %arg10[%c0_35, %c0_36] : memref<128x256xbf16, #tpu.memory_space<vmem>>, vector<128x256xbf16>
    %cst_37 = arith.constant dense<0.000000e+00> : vector<8x256xf32>
    %72 = tpu.matmul %70, %71, %cst_37 {dimension_numbers = #tpu.dot_dimension_numbers<[1], [0], [0], [1], [0, 0, 1, 1], [], []>} : vector<8x128xbf16>, vector<128x256xbf16>, vector<8x256xf32> -> vector<8x256xf32>
    %73 = vector.extract_strided_slice %72 {offsets = [0, 0], sizes = [8, 128], strides = [1, 1]} : vector<8x256xf32> to vector<8x128xf32>
    %74 = vector.extract_strided_slice %72 {offsets = [0, 128], sizes = [8, 128], strides = [1, 1]} : vector<8x256xf32> to vector<8x128xf32>
    %75 = vector.extract_strided_slice %69 {offsets = [0, 0], sizes = [16, 128], strides = [1, 1]} : vector<16x256xf32> to vector<16x128xf32>
    %76 = vector.extract_strided_slice %69 {offsets = [0, 128], sizes = [16, 128], strides = [1, 1]} : vector<16x256xf32> to vector<16x128xf32>
    %77 = tpu.concatenate %75, %76, %73 in 0 : vector<16x128xf32>, vector<16x128xf32>, vector<8x128xf32> -> vector<40x128xf32>
    %78 = arith.truncf %77 : vector<40x128xf32> to vector<40x128xbf16>
    %cst_38 = arith.constant dense<0.000000e+00> : vector<16x128xf32>
    %79 = tpu.matmul %27, %78, %cst_38 {dimension_numbers = #tpu.dot_dimension_numbers<[1], [0], [0], [1], [0, 0, 1, 1], [], []>} : vector<16x40xbf16>, vector<40x128xbf16>, vector<16x128xf32> -> vector<16x128xf32>
    %80 = arith.truncf %79 : vector<16x128xf32> to vector<16x128xbf16>
    %c0_39 = arith.constant 0 : index
    %c0_40 = arith.constant 0 : index
    %81 = vector.load %arg11[%c0_39, %c0_40] : memref<128x128xbf16, #tpu.memory_space<vmem>>, vector<128x128xbf16>
    %cst_41 = arith.constant dense<0.000000e+00> : vector<16x128xf32>
    %82 = tpu.matmul %80, %81, %cst_41 {dimension_numbers = #tpu.dot_dimension_numbers<[1], [0], [0], [1], [0, 0, 1, 1], [], []>} : vector<16x128xbf16>, vector<128x128xbf16>, vector<16x128xf32> -> vector<16x128xf32>
    %cst_42 = arith.constant 0.000000e+00 : f32
    %83 = vector.broadcast %cst_42 : f32 to vector<16x128xf32>
    %84 = arith.cmpf ogt, %82, %83 : vector<16x128xf32>
    %cst_43 = arith.constant 2.000000e-01 : f32
    %85 = vector.broadcast %cst_43 : f32 to vector<16x128xf32>
    %86 = arith.mulf %85, %82 : vector<16x128xf32>
    %87 = arith.select %84, %82, %86 : vector<16x128xi1>, vector<16x128xf32>
    %cst_44 = arith.constant 0.000000e+00 : f32
    %88 = vector.broadcast %cst_44 : f32 to vector<16x128xf32>
    %89 = arith.subf %88, %87 : vector<16x128xf32>
    %90 = math.exp %89 : vector<16x128xf32>
    %91 = arith.mulf %90, %79 : vector<16x128xf32>
    %92 = arith.truncf %91 : vector<16x128xf32> to vector<16x128xbf16>
    %cst_45 = arith.constant dense<0.000000e+00> : vector<16x128xf32>
    %93 = tpu.matmul %7, %92, %cst_45 {dimension_numbers = #tpu.dot_dimension_numbers<[1], [0], [0], [1], [0, 0, 1, 1], [], []>} : vector<16x16xbf16>, vector<16x128xbf16>, vector<16x128xf32> -> vector<16x128xf32>
    %94 = arith.truncf %90 : vector<16x128xf32> to vector<16x128xbf16>
    %cst_46 = arith.constant dense<0.000000e+00> : vector<16x128xf32>
    %95 = tpu.matmul %7, %94, %cst_46 {dimension_numbers = #tpu.dot_dimension_numbers<[1], [0], [0], [1], [0, 0, 1, 1], [], []>} : vector<16x16xbf16>, vector<16x128xbf16>, vector<16x128xf32> -> vector<16x128xf32>
    %cst_47 = arith.constant 9.99999996E-13 : f32
    %96 = vector.broadcast %cst_47 : f32 to vector<16x128xf32>
    %97 = arith.addf %95, %96 : vector<16x128xf32>
    %98 = arith.divf %93, %97 : vector<16x128xf32>
    %cst_48 = arith.constant 0.000000e+00 : f32
    %99 = vector.broadcast %cst_48 : f32 to vector<16x128xf32>
    %100 = arith.cmpf ogt, %98, %99 : vector<16x128xf32>
    %101 = math.exp %98 : vector<16x128xf32>
    %cst_49 = arith.constant 1.000000e+00 : f32
    %102 = vector.broadcast %cst_49 : f32 to vector<16x128xf32>
    %103 = arith.subf %101, %102 : vector<16x128xf32>
    %104 = arith.select %100, %98, %103 : vector<16x128xi1>, vector<16x128xf32>
    %c0_50 = arith.constant 0 : index
    %c0_51 = arith.constant 0 : index
    %105 = vector.load %arg16[%c0_50, %c0_51] : memref<16x1xf32, #tpu.memory_space<vmem>>, vector<16x1xf32>
    %106 = vector.broadcast %105 : vector<16x1xf32> to vector<16x128xf32>
    %107 = arith.mulf %106, %104 : vector<16x128xf32>
    %108 = arith.addf %36, %107 : vector<16x128xf32>
    %109 = arith.mulf %108, %108 : vector<16x128xf32>
    %cst_52 = arith.constant dense<0.000000e+00> : vector<16xf32>
    %110 = vector.multi_reduction <add>, %109, %cst_52 [1] : vector<16x128xf32> to vector<16xf32>
    %111 = vector.shape_cast %110 : vector<16xf32> to vector<16x1xf32>
    %cst_53 = arith.constant 1.000000e-24 : f32
    %112 = vector.broadcast %cst_53 : f32 to vector<16x1xf32>
    %113 = arith.maximumf %111, %112 : vector<16x1xf32>
    %114 = math.rsqrt %113 : vector<16x1xf32>
    %115 = vector.broadcast %114 : vector<16x1xf32> to vector<16x128xf32>
    %116 = arith.mulf %108, %115 : vector<16x128xf32>
    %c0_54 = arith.constant 0 : index
    %c0_55 = arith.constant 0 : index
    %117 = vector.load %arg17[%c0_54, %c0_55] : memref<16x128xf32, #tpu.memory_space<vmem>>, vector<16x128xf32>
    tpu.vector_store %arg17[%c0_54, %c0_55], %116 {strides = array<i32>} : memref<16x128xf32, #tpu.memory_space<vmem>>, vector<16x128xf32>,
    %c0_56 = arith.constant 0 : index
    %c0_57 = arith.constant 0 : index
    %118 = vector.load %arg12[%c0_56, %c0_57] : memref<16x8xbf16, #tpu.memory_space<vmem>>, vector<16x8xbf16>
    %119 = arith.truncf %74 : vector<8x128xf32> to vector<8x128xbf16>
    %cst_58 = arith.constant dense<0.000000e+00> : vector<16x128xf32>
    %120 = tpu.matmul %118, %119, %cst_58 {dimension_numbers = #tpu.dot_dimension_numbers<[1], [0], [0], [1], [0, 0, 1, 1], [], []>} : vector<16x8xbf16>, vector<8x128xbf16>, vector<16x128xf32> -> vector<16x128xf32>
    %c0_59 = arith.constant 0 : index
    %c0_60 = arith.constant 0 : index
    %121 = vector.load %arg13[%c0_59, %c0_60] : memref<1x128xf32, #tpu.memory_space<vmem>>, vector<1x128xf32>
    %122 = vector.broadcast %121 : vector<1x128xf32> to vector<16x128xf32>
    %123 = arith.addf %120, %122 : vector<16x128xf32>
    %cst_61 = arith.constant 0.000000e+00 : f32
    %124 = vector.broadcast %cst_61 : f32 to vector<16x128xf32>
    %125 = arith.cmpf ogt, %123, %124 : vector<16x128xf32>
    %cst_62 = arith.constant 2.500000e-01 : f32
    %126 = vector.broadcast %cst_62 : f32 to vector<16x128xf32>
    %127 = arith.mulf %126, %123 : vector<16x128xf32>
    %128 = arith.select %125, %123, %127 : vector<16x128xi1>, vector<16x128xf32>
    %129 = vector.extract_strided_slice %128 {offsets = [0, 0], sizes = [8, 128], strides = [1, 1]} : vector<16x128xf32> to vector<8x128xf32>
    %c0_63 = arith.constant 0 : index
    %c0_64 = arith.constant 0 : index
    %130 = vector.load %arg18[%c0_63, %c0_64] : memref<8x128xf32, #tpu.memory_space<vmem>>, vector<8x128xf32>
    tpu.vector_store %arg18[%c0_63, %c0_64], %129 {strides = array<i32>} : memref<8x128xf32, #tpu.memory_space<vmem>>, vector<8x128xf32>,
    %cst_65 = arith.constant dense<0.000000e+00> : vector<128xf32>
    %131 = vector.multi_reduction <add>, %38, %cst_65 [0] : vector<8x128xf32> to vector<128xf32>
    %132 = vector.shape_cast %131 : vector<128xf32> to vector<1x128xf32>
    %cst_66 = arith.constant 8.000000e+00 : f32
    %133 = vector.broadcast %cst_66 : f32 to vector<1x128xf32>
    %134 = arith.divf %132, %133 : vector<1x128xf32>
    %cst_67 = arith.constant 0.000000e+00 : f32
    %135 = vector.broadcast %cst_67 : f32 to vector<1x128xf32>
    %136 = arith.subf %135, %134 : vector<1x128xf32>
    %137 = math.exp %136 : vector<1x128xf32>
    %cst_68 = arith.constant 1.000000e+00 : f32
    %138 = vector.broadcast %cst_68 : f32 to vector<1x128xf32>
    %139 = arith.addf %138, %137 : vector<1x128xf32>
    %cst_69 = arith.constant 1.000000e+00 : f32
    %140 = vector.broadcast %cst_69 : f32 to vector<1x128xf32>
    %141 = arith.divf %140, %139 : vector<1x128xf32>
    %142 = arith.truncf %141 : vector<1x128xf32> to vector<1x128xbf16>
    %c0_70 = arith.constant 0 : index
    %c0_71 = arith.constant 0 : index
    %143 = vector.load %arg14[%c0_70, %c0_71] : memref<128x128xbf16, #tpu.memory_space<vmem>>, vector<128x128xbf16>
    %cst_72 = arith.constant dense<0.000000e+00> : vector<1x128xf32>
    %144 = tpu.matmul %142, %143, %cst_72 {dimension_numbers = #tpu.dot_dimension_numbers<[1], [0], [0], [1], [0, 0, 1, 1], [], []>} : vector<1x128xbf16>, vector<128x128xbf16>, vector<1x128xf32> -> vector<1x128xf32>
    %145 = vector.broadcast %144 : vector<1x128xf32> to vector<16x128xf32>
    %146 = arith.mulf %128, %145 : vector<16x128xf32>
    %cst_73 = arith.constant dense<0.000000e+00> : vector<16xf32>
    %147 = vector.multi_reduction <add>, %146, %cst_73 [1] : vector<16x128xf32> to vector<16xf32>
    %148 = vector.shape_cast %147 : vector<16xf32> to vector<16x1xf32>
    %c0_74 = arith.constant 0 : index
    %c0_75 = arith.constant 0 : index
    %149 = vector.load %arg15[%c0_74, %c0_75] : memref<1x1xf32, #tpu.memory_space<vmem>>, vector<1x1xf32>
    %150 = vector.broadcast %149 : vector<1x1xf32> to vector<16x1xf32>
    %151 = arith.addf %148, %150 : vector<16x1xf32>
    %c0_76 = arith.constant 0 : index
    %c0_77 = arith.constant 0 : index
    %152 = vector.load %arg19[%c0_76, %c0_77] : memref<16x1xf32, #tpu.memory_space<vmem>>, vector<16x1xf32>
    tpu.vector_store %arg19[%c0_76, %c0_77], %151 {strides = array<i32>} : memref<16x1xf32, #tpu.memory_space<vmem>>, vector<16x1xf32>,
    return
  }
}

</mosaic_0001>

<llo_original>
// kernel: tpu_custom_call.1
$region0: #{tpu_custom_call.1}
  #allocation0 [shape = 'u32[]', space=smem, size = 0x4, offset = 0x4, fixed_abs, tag = 'smem constant byte address 0x4 - core index']
  #allocation1 [shape = 'u32[144,128]{1,0:T(1,128)}', space=vmem, size = 0x12000, scoped, tag = 'internal scratch']
  #allocation2 [shape = 'f32[1,1]{1,0:T(1,128)S(1)}', space=vmem, size = 0x200, scoped, tag = 'scoped memory for tpu_custom_call.1']
  %s0 = inlined_call_operand.hbm [shape: s32[1,16], index: 0, kind: input, shape index: {}]
  %s1 = inlined_call_operand.vmem [shape: s32[16,1], index: 1, kind: input, shape index: {}]
  %s2 = inlined_call_operand.vmem [shape: s32[16,1], index: 2, kind: input, shape index: {}]
  %s3 = inlined_call_operand.vmem [shape: s32[16,1], index: 3, kind: input, shape index: {}]
  %s4 = inlined_call_operand.hbm [shape: bf16[16,32], index: 4, kind: input, shape index: {}]
  %s5 = inlined_call_operand.hbm [shape: bf16[8,32], index: 5, kind: input, shape index: {}]
  %s6 = inlined_call_operand.hbm [shape: bf16[32,384], index: 6, kind: input, shape index: {}]
  %s7 = inlined_call_operand.vmem [shape: bf16[32,256], index: 7, kind: input, shape index: {}]
  %s8 = inlined_call_operand.vmem [shape: bf16[128,128], index: 8, kind: input, shape index: {}]
  %s9 = inlined_call_operand.hbm [shape: bf16[128,256], index: 9, kind: input, shape index: {}]
  %s10 = inlined_call_operand.hbm [shape: bf16[128,256], index: 10, kind: input, shape index: {}]
  %s11 = inlined_call_operand.hbm [shape: bf16[128,128], index: 11, kind: input, shape index: {}]
  %s12 = inlined_call_operand.vmem [shape: bf16[16,8], index: 12, kind: input, shape index: {}]
  %s13 = inlined_call_operand.vmem [shape: f32[1,128], index: 13, kind: input, shape index: {}]
  %s14 = inlined_call_operand.hbm [shape: bf16[128,128], index: 14, kind: input, shape index: {}]
  %s15 = inlined_call_operand.<no memory space> [shape: f32[1,1], index: 15, kind: input, shape index: {}]
  %s16 = inlined_call_operand.vmem [shape: f32[16,1], index: 16, kind: input, shape index: {}]
  %s17 = inlined_call_operand.hbm [shape: f32[16,128], index: 17, kind: output, shape index: {0}]
  %s18 = inlined_call_operand.hbm [shape: f32[8,128], index: 18, kind: output, shape index: {1}]
  %s19 = inlined_call_operand.vmem [shape: f32[16,1], index: 19, kind: output, shape index: {2}]
  %20 = xla_tuple %s17, %s18, %s19
  %s21 = sld [smem:[#allocation0]]
  $region126: #{tpu_custom_call.1} parent=0
    _
  %s23 = ssub.s32 1, %s21
  %s24 = scalar_select 0, %s23, %s21
  %v25 = vstv %s15
  %26 = vst [vmem:[#allocation2] sm:$0x1] %v25
  $region1: #{tpu_custom_call.1} parent=0
    #allocation3 [shape = 'u8[512]{0}', space=vmem, size = 0x400, scoped, tag = 'input window, operand 0, single buffered']
    #allocation4 [shape = 's32[1]{0}', space=sflag, size = 0x4, scoped, tag = 'scoped memory for tpu_custom_call.1']
    #allocation5 [shape = 's32[1]{0}', space=sflag, size = 0x4, scoped, tag = 'scoped memory for tpu_custom_call.1']
    #allocation6 [shape = 'u8[4096]{0}', space=vmem, size = 0x1000, scoped, tag = 'input window, operand 4, single buffered']
    #allocation7 [shape = 's32[1]{0}', space=sflag, size = 0x4, scoped, tag = 'scoped memory for tpu_custom_call.1']
    #allocation8 [shape = 'u8[2048]{0}', space=vmem, size = 0x800, scoped, tag = 'input window, operand 5, single buffered']
    #allocation9 [shape = 'u8[24576]{0}', space=vmem, size = 0x6000, scoped, tag = 'input window, operand 6, single buffered']
    #allocation10 [shape = 's32[1]{0}', space=sflag, size = 0x4, scoped, tag = 'scoped memory for tpu_custom_call.1']
    #allocation11 [shape = 'u8[65536]{0}', space=vmem, size = 0x10000, scoped, tag = 'input window, operand 9, single buffered']
    #allocation12 [shape = 'u8[65536]{0}', space=vmem, size = 0x10000, scoped, tag = 'input window, operand 10, single buffered']
    #allocation13 [shape = 's32[1]{0}', space=sflag, size = 0x4, scoped, tag = 'scoped memory for tpu_custom_call.1']
    #allocation14 [shape = 'u8[32768]{0}', space=vmem, size = 0x8000, scoped, tag = 'input window, operand 11, single buffered']
    #allocation15 [shape = 'u8[32768]{0}', space=vmem, size = 0x8000, scoped, tag = 'input window, operand 14, single buffered']
    #allocation16 [shape = 's32[1]{0}', space=sflag, size = 0x4, scoped, tag = 'scoped memory for tpu_custom_call.1']
    #allocation17 [shape = 'u8[8192]{0}', space=vmem, size = 0x2000, scoped, tag = 'output window, operand 0, single buffered']
    #allocation18 [shape = 'u8[4096]{0}', space=vmem, size = 0x1000, scoped, tag = 'output window, operand 1, single buffered']
    #allocation19 [shape = 's32[1]{0}', space=sflag, size = 0x4, scoped, tag = 'scoped memory for tpu_custom_call.1']
    %27 = vsyncpa [#allocation4], 0
    %28 = vsyncpa [#allocation7], 0
    %29 = vsyncpa [#allocation10], 0
    %30 = vsyncpa [#allocation13], 0
    %31 = vsyncpa [#allocation16], 0
    %32 = vsyncpa [#allocation5], 0
    %33 = vsyncpa [#allocation19], 0
    // Predicated region
    $region2: #{tpu_custom_call.1} parent=1 // pred_check
      _
    $region3: #{tpu_custom_call.1} parent=1 // pred_check_branch
      %35 = sbr.rel (0) target = $region5
    $region4: #{tpu_custom_call.1} parent=1 // pred_region
      %s37 = ssub.s32 16, 16
      %38 = vsyncadd [#allocation4], %s37
      %s40 = sshll.u32 [#allocation3], 4
      %s41 = int_to_ptr.vmem [resolvable:$true] %s40
      %43 = dma.hbm_to_vmem [thread:$0]  %s0, 16, %s41, [#allocation4]
    $region5: #{tpu_custom_call.1} parent=1 // pred_fallthru
      _
    // Predicated region
    $region6: #{tpu_custom_call.1} parent=1 // pred_check
      _
    $region7: #{tpu_custom_call.1} parent=1 // pred_check_branch
      %45 = sbr.rel (0) target = $region9
    $region8: #{tpu_custom_call.1} parent=1 // pred_region
      _
    $region9: #{tpu_custom_call.1} parent=1 // pred_fallthru
      _
    // Predicated region
    $region10: #{tpu_custom_call.1} parent=1 // pred_check
      _
    $region11: #{tpu_custom_call.1} parent=1 // pred_check_branch
      %47 = sbr.rel (0) target = $region13
    $region12: #{tpu_custom_call.1} parent=1 // pred_region
      _
    $region13: #{tpu_custom_call.1} parent=1 // pred_fallthru
      _
    // Predicated region
    $region14: #{tpu_custom_call.1} parent=1 // pred_check
      _
    $region15: #{tpu_custom_call.1} parent=1 // pred_check_branch
      %49 = sbr.rel (0) target = $region17
    $region16: #{tpu_custom_call.1} parent=1 // pred_region
      _
    $region17: #{tpu_custom_call.1} parent=1 // pred_fallthru
      _
    // Predicated region
    $region18: #{tpu_custom_call.1} parent=1 // pred_check
      _
    $region19: #{tpu_custom_call.1} parent=1 // pred_check_branch
      %51 = sbr.rel (0) target = $region21
    $region20: #{tpu_custom_call.1} parent=1 // pred_region
      %s53 = ssub.s32 128, 128
      %54 = vsyncadd [#allocation7], %s53
      %s55 = sshll.u32 [#allocation6], 4
      %s56 = int_to_ptr.vmem [resolvable:$true] %s55
      %61 = dma.hbm_to_vmem [thread:$0]  %s4, 128, %s56, [#allocation7], 64, 64, 4
    $region21: #{tpu_custom_call.1} parent=1 // pred_fallthru
      _
    // Predicated region
    $region22: #{tpu_custom_call.1} parent=1 // pred_check
      _
    $region23: #{tpu_custom_call.1} parent=1 // pred_check_branch
      %63 = sbr.rel (0) target = $region25
    $region24: #{tpu_custom_call.1} parent=1 // pred_region
      %s65 = ssub.s32 64, 64
      %66 = vsyncadd [#allocation7], %s65
      %s68 = sshll.u32 [#allocation8], 4
      %s69 = int_to_ptr.vmem [resolvable:$true] %s68
      %71 = dma.hbm_to_vmem [thread:$0]  %s5, 64, %s69, [#allocation7]
    $region25: #{tpu_custom_call.1} parent=1 // pred_fallthru
      _
    // Predicated region
    $region26: #{tpu_custom_call.1} parent=1 // pred_check
      _
    $region27: #{tpu_custom_call.1} parent=1 // pred_check_branch
      %73 = sbr.rel (0) target = $region29
    $region28: #{tpu_custom_call.1} parent=1 // pred_region
      %s75 = ssub.s32 768, 768
      %76 = vsyncadd [#allocation10], %s75
      %s77 = sshll.u32 [#allocation9], 4
      %s78 = int_to_ptr.vmem [resolvable:$true] %s77
      %83 = dma.hbm_to_vmem [thread:$0]  %s6, 768, %s78, [#allocation10], 192, 192, 12
    $region29: #{tpu_custom_call.1} parent=1 // pred_fallthru
      _
    // Predicated region
    $region30: #{tpu_custom_call.1} parent=1 // pred_check
      _
    $region31: #{tpu_custom_call.1} parent=1 // pred_check_branch
      %85 = sbr.rel (0) target = $region33
    $region32: #{tpu_custom_call.1} parent=1 // pred_region
      _
    $region33: #{tpu_custom_call.1} parent=1 // pred_fallthru
      _
    // Predicated region
    $region34: #{tpu_custom_call.1} parent=1 // pred_check
      _
    $region35: #{tpu_custom_call.1} parent=1 // pred_check_branch
      %87 = sbr.rel (0) target = $region37
    $region36: #{tpu_custom_call.1} parent=1 // pred_region
      _
    $region37: #{tpu_custom_call.1} parent=1 // pred_fallthru
      _
    // Predicated region
    $region38: #{tpu_custom_call.1} parent=1 // pred_check
      _
    $region39: #{tpu_custom_call.1} parent=1 // pred_check_branch
      %89 = sbr.rel (0) target = $region41
    $region40: #{tpu_custom_call.1} parent=1 // pred_region
      %s91 = ssub.s32 2048, 2048
      %92 = vsyncadd [#allocation10], %s91
      %s93 = sshll.u32 [#allocation11], 4
      %s94 = int_to_ptr.vmem [resolvable:$true] %s93
      %99 = dma.hbm_to_vmem [thread:$0]  %s9, 2048, %s94, [#allocation10], 128, 128, 8
    $region41: #{tpu_custom_call.1} parent=1 // pred_fallthru
      _
    // Predicated region
    $region42: #{tpu_custom_call.1} parent=1 // pred_check
      _
    $region43: #{tpu_custom_call.1} parent=1 // pred_check_branch
      %101 = sbr.rel (0) target = $region45
    $region44: #{tpu_custom_call.1} parent=1 // pred_region
      %s103 = ssub.s32 2048, 2048
      %104 = vsyncadd [#allocation13], %s103
      %s105 = sshll.u32 [#allocation12], 4
      %s106 = int_to_ptr.vmem [resolvable:$true] %s105
      %111 = dma.hbm_to_vmem [thread:$0]  %s10, 2048, %s106, [#allocation13], 128, 128, 8
    $region45: #{tpu_custom_call.1} parent=1 // pred_fallthru
      _
    // Predicated region
    $region46: #{tpu_custom_call.1} parent=1 // pred_check
      _
    $region47: #{tpu_custom_call.1} parent=1 // pred_check_branch
      %113 = sbr.rel (0) target = $region49
    $region48: #{tpu_custom_call.1} parent=1 // pred_region
      %s115 = ssub.s32 1024, 1024
      %116 = vsyncadd [#allocation13], %s115
      %s117 = sshll.u32 [#allocation14], 4
      %s118 = int_to_ptr.vmem [resolvable:$true] %s117
      %123 = dma.hbm_to_vmem [thread:$0]  %s11, 1024, %s118, [#allocation13], 64, 64, 4
    $region49: #{tpu_custom_call.1} parent=1 // pred_fallthru
      _
    // Predicated region
    $region50: #{tpu_custom_call.1} parent=1 // pred_check
      _
    $region51: #{tpu_custom_call.1} parent=1 // pred_check_branch
      %125 = sbr.rel (0) target = $region53
    $region52: #{tpu_custom_call.1} parent=1 // pred_region
      _
    $region53: #{tpu_custom_call.1} parent=1 // pred_fallthru
      _
    // Predicated region
    $region54: #{tpu_custom_call.1} parent=1 // pred_check
      _
    $region55: #{tpu_custom_call.1} parent=1 // pred_check_branch
      %127 = sbr.rel (0) target = $region57
    $region56: #{tpu_custom_call.1} parent=1 // pred_region
      _
    $region57: #{tpu_custom_call.1} parent=1 // pred_fallthru
      _
    // Predicated region
    $region58: #{tpu_custom_call.1} parent=1 // pred_check
      _
    $region59: #{tpu_custom_call.1} parent=1 // pred_check_branch
      %129 = sbr.rel (0) target = $region61
    $region60: #{tpu_custom_call.1} parent=1 // pred_region
      %s131 = ssub.s32 1024, 1024
      %132 = vsyncadd [#allocation16], %s131
      %s133 = sshll.u32 [#allocation15], 4
      %s134 = int_to_ptr.vmem [resolvable:$true] %s133
      %139 = dma.hbm_to_vmem [thread:$0]  %s14, 1024, %s134, [#allocation16], 64, 64, 4
    $region61: #{tpu_custom_call.1} parent=1 // pred_fallthru
      _
    // Predicated region
    $region62: #{tpu_custom_call.1} parent=1 // pred_check
      _
    $region63: #{tpu_custom_call.1} parent=1 // pred_check_branch
      %141 = sbr.rel (0) target = $region65
    $region64: #{tpu_custom_call.1} parent=1 // pred_region
      _
    $region65: #{tpu_custom_call.1} parent=1 // pred_fallthru
      _
    // Predicated region
    $region66: #{tpu_custom_call.1} parent=1 // pred_check
      _
    $region67: #{tpu_custom_call.1} parent=1 // pred_check_branch
      %143 = sbr.rel (0) target = $region69
    $region68: #{tpu_custom_call.1} parent=1 // pred_region
      _
    $region69: #{tpu_custom_call.1} parent=1 // pred_fallthru
      _
    // Predicated region
    $region70: #{tpu_custom_call.1} parent=1 // pred_check
      _
    $region71: #{tpu_custom_call.1} parent=1 // pred_check_branch
      %145 = sbr.rel (0) target = $region73
    $region72: #{tpu_custom_call.1} parent=1 // pred_region
      %146 = dma.done [#allocation4], 16
    $region73: #{tpu_custom_call.1} parent=1 // pred_fallthru
      _
    // Predicated region
    $region74: #{tpu_custom_call.1} parent=1 // pred_check
      _
    $region75: #{tpu_custom_call.1} parent=1 // pred_check_branch
      %148 = sbr.rel (0) target = $region77
    $region76: #{tpu_custom_call.1} parent=1 // pred_region
      %149 = dma.done [#allocation7], 128
    $region77: #{tpu_custom_call.1} parent=1 // pred_fallthru
      _
    // Predicated region
    $region78: #{tpu_custom_call.1} parent=1 // pred_check
      _
    $region79: #{tpu_custom_call.1} parent=1 // pred_check_branch
      %151 = sbr.rel (0) target = $region81
    $region80: #{tpu_custom_call.1} parent=1 // pred_region
      %152 = dma.done [#allocation7], 64
    $region81: #{tpu_custom_call.1} parent=1 // pred_fallthru
      _
    // Predicated region
    $region82: #{tpu_custom_call.1} parent=1 // pred_check
      _
    $region83: #{tpu_custom_call.1} parent=1 // pred_check_branch
      %154 = sbr.rel (0) target = $region85
    $region84: #{tpu_custom_call.1} parent=1 // pred_region
      %155 = dma.done [#allocation10], 768
    $region85: #{tpu_custom_call.1} parent=1 // pred_fallthru
      _
    // Predicated region
    $region86: #{tpu_custom_call.1} parent=1 // pred_check
      _
    $region87: #{tpu_custom_call.1} parent=1 // pred_check_branch
      %157 = sbr.rel (0) target = $region89
    $region88: #{tpu_custom_call.1} parent=1 // pred_region
      %158 = dma.done [#allocation10], 2048
    $region89: #{tpu_custom_call.1} parent=1 // pred_fallthru
      _
    // Predicated region
    $region90: #{tpu_custom_call.1} parent=1 // pred_check
      _
    $region91: #{tpu_custom_call.1} parent=1 // pred_check_branch
      %160 = sbr.rel (0) target = $region93
    $region92: #{tpu_custom_call.1} parent=1 // pred_region
      %161 = dma.done [#allocation13], 2048
    $region93: #{tpu_custom_call.1} parent=1 // pred_fallthru
      _
    // Predicated region
    $region94: #{tpu_custom_call.1} parent=1 // pred_check
      _
    $region95: #{tpu_custom_call.1} parent=1 // pred_check_branch
      %163 = sbr.rel (0) target = $region97
    $region96: #{tpu_custom_call.1} parent=1 // pred_region
      %164 = dma.done [#allocation13], 1024
    $region97: #{tpu_custom_call.1} parent=1 // pred_fallthru
      _
    // Predicated region
    $region98: #{tpu_custom_call.1} parent=1 // pred_check
      _
    $region99: #{tpu_custom_call.1} parent=1 // pred_check_branch
      %166 = sbr.rel (0) target = $region101
    $region100: #{tpu_custom_call.1} parent=1 // pred_region
      %167 = dma.done [#allocation16], 1024
    $region101: #{tpu_custom_call.1} parent=1 // pred_fallthru
      _
    %v169 = vlaneseq
    %v170 = vshrl.u32 %v169, 7
    %v171 = vadd.s32 %v170, 8
    %v172 = vld [vmem:[#allocation3] sm:$0x1]
    %v173 = vlaneseq
    %v174 = vshrl.u32 %v173, 7
    %v175 = vsub.s32 0, %v174
    %v176 = vrot.slane %v172, %v175
    %vm177 = vcmp.eq.s32.totalorder %v170, %v176
    %vm178 = vcmp.eq.s32.totalorder %v171, %v176
    %v179 = vsel %vm177, 1.0, 0.0
    %v180 = vsel %vm178, 1.0, 0.0
    %v181 = vpack.c.bf16 %v180, %v179
    %v182 = vlaneseq
    %v183 = vand.u32 %v182, 127
    %v184 = vld [vmem:[%s1] sm:$0xff]
    %v185 = vld [vmem:[%s1 + $0x8] sm:$0xff]
    %186 = vset.pattern.permute.xlu0 0
    %187 = vperm.xlu0 %186, %v184
    %v188 = vpop.permute.xlu0 %187
    %189 = vset.pattern.permute.xlu0 0
    %190 = vperm.xlu0 %189, %v185
    %v191 = vpop.permute.xlu0 %190
    %vm192 = vcmp.eq.s32.totalorder %v183, %v188
    %vm193 = vcmp.eq.s32.totalorder %v183, %v191
    %v194 = vld [vmem:[%s2] sm:$0xff]
    %v195 = vld [vmem:[%s2 + $0x8] sm:$0xff]
    %v196 = vadd.s32 %v194, 16
    %v197 = vadd.s32 %v195, 16
    %198 = vset.pattern.permute.xlu0 0
    %199 = vperm.xlu0 %198, %v196
    %v200 = vpop.permute.xlu0 %199
    %201 = vset.pattern.permute.xlu0 0
    %202 = vperm.xlu0 %201, %v197
    %v203 = vpop.permute.xlu0 %202
    %vm204 = vcmp.eq.s32.totalorder %v183, %v200
    %vm205 = vcmp.eq.s32.totalorder %v183, %v203
    %vm206 = vmor %vm192, %vm204
    %vm207 = vmor %vm193, %vm205
    %v208 = vld [vmem:[%s3] sm:$0xff]
    %v209 = vld [vmem:[%s3 + $0x8] sm:$0xff]
    %v210 = vadd.s32 %v208, 32
    %v211 = vadd.s32 %v209, 32
    %212 = vset.pattern.permute.xlu0 0
    %213 = vperm.xlu0 %212, %v210
    %v214 = vpop.permute.xlu0 %213
    %215 = vset.pattern.permute.xlu0 0
    %216 = vperm.xlu0 %215, %v211
    %v217 = vpop.permute.xlu0 %216
    %vm218 = vcmp.eq.s32.totalorder %v183, %v214
    %vm219 = vcmp.eq.s32.totalorder %v183, %v217
    %vm220 = vmor %vm206, %vm218
    %vm221 = vmor %vm207, %vm219
    %v222 = vsel %vm220, 1.0, 0.0
    %v223 = vsel %vm221, 1.0, 0.0
    %v224 = vpack.c.bf16 %v223, %v222
    %v225 = vld [vmem:[#allocation6] sm:$0xf]
    %v226 = vld [vmem:[#allocation6 + $0x4] sm:$0xf]
    %v227 = vld [vmem:[#allocation9] sm:$0xff]
    %v228 = vld [vmem:[#allocation9 + $0x8] sm:$0xf]
    %v229 = vld [vmem:[#allocation9 + $0xc] sm:$0xff]
    %v230 = vld [vmem:[#allocation9 + $0x14] sm:$0xf]
    %v231 = vld [vmem:[#allocation9 + $0x18] sm:$0xff]
    %v232 = vld [vmem:[#allocation9 + $0x20] sm:$0xf]
    %v233 = vld [vmem:[#allocation9 + $0x24] sm:$0xff]
    %v234 = vld [vmem:[#allocation9 + $0x2c] sm:$0xf]
    %v237 = vunpack.c.l.b16 %v225
    %v238 = vunpack.c.l.b16 %v226
    %v239 = vpack.c.b16 %v238, %v237
    %v248 = vunpack.c.l.b16 %v227
    %v249 = vunpack.c.h.b16 %v227
    %v250 = vunpack.c.l.b16 %v228
    %v251 = vunpack.c.l.b16 %v229
    %v252 = vunpack.c.h.b16 %v229
    %v253 = vunpack.c.l.b16 %v230
    %v254 = vunpack.c.l.b16 %v231
    %v255 = vunpack.c.h.b16 %v231
    %v256 = vunpack.c.l.b16 %v232
    %v257 = vunpack.c.l.b16 %v233
    %v258 = vunpack.c.h.b16 %v233
    %v259 = vunpack.c.l.b16 %v234
    %v260 = vpack.c.b16 %v251, %v248
    %v261 = vpack.c.b16 %v252, %v249
    %v262 = vpack.c.b16 %v253, %v250
    %v263 = vpack.c.b16 %v257, %v254
    %v264 = vpack.c.b16 %v258, %v255
    %v265 = vpack.c.b16 %v259, %v256
    %vm272 = vcmask 261120
    %v274 = vsel %vm272, %v239, 0
    %276 = vmatprep.subr.bf16.mxu0 0
    %277 = vmatpush1.bf16.msra.mxu0 0
    %278 = vmatprep.subr.bf16.mxu0 0
    %279 = vmatpush1.bf16.msra.mxu0 0
    %280 = vmatprep.subr.bf16.mxu0 0
    %281 = vmatpush1.bf16.msra.mxu0 0
    %282 = vmatprep.subr.bf16.mxu0 0
    %283 = vmatpush1.bf16.msra.mxu0 0
    %284 = vmatprep.subr.bf16.mxu0 0
    %285 = vmatpush1.bf16.msra.mxu0 0
    %286 = vmatprep.subr.bf16.mxu0 0
    %287 = vmatpush1.bf16.msra.mxu0 0
    %288 = vmatprep.subr.bf16.mxu0 %v264
    %289 = vmatpush1.bf16.msra.mxu0 %v263
    %290 = vmatprep.subr.bf16.mxu0 %v261
    %291 = vmatpush1.bf16.msra.mxu0 %v260
    %292 = vmatprep.subr.bf16.mxu0 0
    %293 = vmatpush2.bf16.msra.mxu0 0
    %294 = vmatprep.subr.bf16.mxu0 0
    %295 = vmatpush2.bf16.msra.mxu0 0
    %296 = vmatprep.subr.bf16.mxu0 0
    %297 = vmatpush2.bf16.msra.mxu0 0
    %298 = vmatprep.subr.bf16.mxu0 0
    %299 = vmatpush2.bf16.msra.mxu0 0
    %300 = vmatprep.subr.bf16.mxu0 0
    %301 = vmatpush2.bf16.msra.mxu0 0
    %302 = vmatprep.subr.bf16.mxu0 0
    %303 = vmatpush2.bf16.msra.mxu0 0
    %304 = vmatprep.subr.bf16.mxu0 0
    %305 = vmatpush2.bf16.msra.mxu0 0
    %306 = vmatprep.subr.bf16.mxu0 0
    %307 = vmatpush2.bf16.msra.mxu0 0
    %308 = vmatprep.mubr.bf16.mxu0 0
    %309 = vmatmul.mubr.bf16.gmra.mxu0 %v274
    %v310 = vpop.f32.mrf.mxu0
    %v311 = vadd.f32 0.0, %v310
    %v312 = vpop.f32.mrf.mxu0
    %v313 = vadd.f32 0.0, %v312
    %v314 = vpop.f32.mrf.mxu0
    %v315 = vadd.f32 0.0, %v314
    %v316 = vpop.f32.mrf.mxu0
    %v317 = vadd.f32 0.0, %v316
    %318 = vdwg.mxu0
    %319 = vmatprep.subr.bf16.mxu0 0
    %320 = vmatpush1.bf16.msra.mxu0 0
    %321 = vmatprep.subr.bf16.mxu0 0
    %322 = vmatpush1.bf16.msra.mxu0 0
    %323 = vmatprep.subr.bf16.mxu0 0
    %324 = vmatpush1.bf16.msra.mxu0 0
    %325 = vmatprep.subr.bf16.mxu0 0
    %326 = vmatpush1.bf16.msra.mxu0 0
    %327 = vmatprep.subr.bf16.mxu0 0
    %328 = vmatpush1.bf16.msra.mxu0 0
    %329 = vmatprep.subr.bf16.mxu0 0
    %330 = vmatpush1.bf16.msra.mxu0 0
    %331 = vmatprep.subr.bf16.mxu0 0
    %332 = vmatpush1.bf16.msra.mxu0 %v265
    %333 = vmatprep.subr.bf16.mxu0 0
    %334 = vmatpush1.bf16.msra.mxu0 %v262
    %335 = vmatprep.subr.bf16.mxu0 0
    %336 = vmatpush2.bf16.msra.mxu0 0
    %337 = vmatprep.subr.bf16.mxu0 0
    %338 = vmatpush2.bf16.msra.mxu0 0
    %339 = vmatprep.subr.bf16.mxu0 0
    %340 = vmatpush2.bf16.msra.mxu0 0
    %341 = vmatprep.subr.bf16.mxu0 0
    %342 = vmatpush2.bf16.msra.mxu0 0
    %343 = vmatprep.subr.bf16.mxu0 0
    %344 = vmatpush2.bf16.msra.mxu0 0
    %345 = vmatprep.subr.bf16.mxu0 0
    %346 = vmatpush2.bf16.msra.mxu0 0
    %347 = vmatprep.subr.bf16.mxu0 0
    %348 = vmatpush2.bf16.msra.mxu0 0
    %349 = vmatprep.subr.bf16.mxu0 0
    %350 = vmatpush2.bf16.msra.mxu0 0
    %351 = vmatprep.mubr.bf16.mxu0 0
    %352 = vmatmul.mubr.bf16.gmra.mxu0 %v274
    %v353 = vpop.f32.mrf.mxu0
    %v354 = vadd.f32 0.0, %v353
    %v355 = vpop.f32.mrf.mxu0
    %v356 = vpop.f32.mrf.mxu0
    %v357 = vadd.f32 0.0, %v356
    %v358 = vpop.f32.mrf.mxu0
    %359 = vdwg.mxu0
    %v360 = vld [vmem:[#allocation8] sm:$0xf]
    %v361 = vld [vmem:[%s7] sm:$0xff]
    %v362 = vld [vmem:[%s7 + $0x8] sm:$0xff]
    %v363 = vld [vmem:[%s7 + $0x10] sm:$0xff]
    %v364 = vld [vmem:[%s7 + $0x18] sm:$0xff]
    %v369 = vunpack.c.l.b16 %v361
    %v370 = vunpack.c.h.b16 %v361
    %v371 = vunpack.c.l.b16 %v362
    %v372 = vunpack.c.h.b16 %v362
    %v373 = vunpack.c.l.b16 %v363
    %v374 = vunpack.c.h.b16 %v363
    %v375 = vunpack.c.l.b16 %v364
    %v376 = vunpack.c.h.b16 %v364
    %v377 = vpack.c.b16 %v371, %v369
    %v378 = vpack.c.b16 %v372, %v370
    %v379 = vpack.c.b16 %v375, %v373
    %v380 = vpack.c.b16 %v376, %v374
    %v386 = vsel %vm272, %v360, 0
    %388 = vmatprep.subr.bf16.mxu0 0
    %389 = vmatpush1.bf16.msra.mxu0 0
    %390 = vmatprep.subr.bf16.mxu0 0
    %391 = vmatpush1.bf16.msra.mxu0 0
    %392 = vmatprep.subr.bf16.mxu0 0
    %393 = vmatpush1.bf16.msra.mxu0 0
    %394 = vmatprep.subr.bf16.mxu0 0
    %395 = vmatpush1.bf16.msra.mxu0 0
    %396 = vmatprep.subr.bf16.mxu0 0
    %397 = vmatpush1.bf16.msra.mxu0 0
    %398 = vmatprep.subr.bf16.mxu0 0
    %399 = vmatpush1.bf16.msra.mxu0 0
    %400 = vmatprep.subr.bf16.mxu0 %v380
    %401 = vmatpush1.bf16.msra.mxu0 %v379
    %402 = vmatprep.subr.bf16.mxu0 %v378
    %403 = vmatpush1.bf16.msra.mxu0 %v377
    %404 = vmatprep.subr.bf16.mxu0 0
    %405 = vmatpush2.bf16.msra.mxu0 0
    %406 = vmatprep.subr.bf16.mxu0 0
    %407 = vmatpush2.bf16.msra.mxu0 0
    %408 = vmatprep.subr.bf16.mxu0 0
    %409 = vmatpush2.bf16.msra.mxu0 0
    %410 = vmatprep.subr.bf16.mxu0 0
    %411 = vmatpush2.bf16.msra.mxu0 0
    %412 = vmatprep.subr.bf16.mxu0 0
    %413 = vmatpush2.bf16.msra.mxu0 0
    %414 = vmatprep.subr.bf16.mxu0 0
    %415 = vmatpush2.bf16.msra.mxu0 0
    %416 = vmatprep.subr.bf16.mxu0 0
    %417 = vmatpush2.bf16.msra.mxu0 0
    %418 = vmatprep.subr.bf16.mxu0 0
    %419 = vmatpush2.bf16.msra.mxu0 0
    %420 = vmatprep.mubr.bf16.mxu0 0
    %421 = vmatmul.mubr.bf16.gmra.mxu0 %v386
    %v422 = vpop.f32.mrf.mxu0
    %v423 = vadd.f32 0.0, %v422
    %v424 = vpop.f32.mrf.mxu0
    %v425 = vadd.f32 0.0, %v424
    %v426 = vpop.f32.mrf.mxu0
    %v427 = vpop.f32.mrf.mxu0
    %428 = vdwg.mxu0
    %v429 = vpack.c.bf16 %v315, %v311
    %v430 = vpack.c.bf16 %v317, %v313
    %v431 = vpack.c.bf16 %v423, %v423
    %vm432 = vcmask 326656
    %v434 = vsel %vm432, %v224, 0
    %vm436 = vcmask 1043456
    %v438 = vsel %vm436, %v431, 0
    %440 = vmatprep.subr.bf16.mxu0 0
    %441 = vmatpush1.bf16.msra.mxu0 0
    %442 = vmatprep.subr.bf16.mxu0 0
    %443 = vmatpush1.bf16.msra.mxu0 0
    %444 = vmatprep.subr.bf16.mxu0 0
    %445 = vmatpush1.bf16.msra.mxu0 0
    %446 = vmatprep.subr.bf16.mxu0 0
    %447 = vmatpush1.bf16.msra.mxu0 0
    %448 = vmatprep.subr.bf16.mxu0 0
    %449 = vmatpush1.bf16.msra.mxu0 0
    %450 = vmatprep.subr.bf16.mxu0 0
    %451 = vmatpush1.bf16.msra.mxu0 %v438
    %452 = vmatprep.subr.bf16.mxu0 0
    %453 = vmatpush1.bf16.msra.mxu0 %v430
    %454 = vmatprep.subr.bf16.mxu0 0
    %455 = vmatpush1.bf16.msra.mxu0 %v429
    %456 = vmatprep.subr.bf16.mxu0 0
    %457 = vmatpush2.bf16.msra.mxu0 0
    %458 = vmatprep.subr.bf16.mxu0 0
    %459 = vmatpush2.bf16.msra.mxu0 0
    %460 = vmatprep.subr.bf16.mxu0 0
    %461 = vmatpush2.bf16.msra.mxu0 0
    %462 = vmatprep.subr.bf16.mxu0 0
    %463 = vmatpush2.bf16.msra.mxu0 0
    %464 = vmatprep.subr.bf16.mxu0 0
    %465 = vmatpush2.bf16.msra.mxu0 0
    %466 = vmatprep.subr.bf16.mxu0 0
    %467 = vmatpush2.bf16.msra.mxu0 0
    %468 = vmatprep.subr.bf16.mxu0 0
    %469 = vmatpush2.bf16.msra.mxu0 0
    %470 = vmatprep.subr.bf16.mxu0 0
    %471 = vmatpush2.bf16.msra.mxu0 0
    %472 = vmatprep.mubr.bf16.mxu0 0
    %473 = vmatmul.mubr.bf16.gmra.mxu0 %v434
    %v474 = vpop.f32.mrf.mxu0
    %v475 = vadd.f32 0.0, %v474
    %v476 = vpop.f32.mrf.mxu0
    %v477 = vpop.f32.mrf.mxu0
    %v478 = vadd.f32 0.0, %v477
    %v479 = vpop.f32.mrf.mxu0
    %480 = vdwg.mxu0
    %v481 = vpack.c.bf16 %v478, %v475
    %v482 = vld [vmem:[%s8] sm:$0xf]
    %v483 = vld [vmem:[%s8 + $0x4] sm:$0xf]
    %v484 = vld [vmem:[%s8 + $0x8] sm:$0xf]
    %v485 = vld [vmem:[%s8 + $0xc] sm:$0xf]
    %v486 = vld [vmem:[%s8 + $0x10] sm:$0xf]
    %v487 = vld [vmem:[%s8 + $0x14] sm:$0xf]
    %v488 = vld [vmem:[%s8 + $0x18] sm:$0xf]
    %v489 = vld [vmem:[%s8 + $0x1c] sm:$0xf]
    %v490 = vld [vmem:[%s8 + $0x20] sm:$0xf]
    %v491 = vld [vmem:[%s8 + $0x24] sm:$0xf]
    %v492 = vld [vmem:[%s8 + $0x28] sm:$0xf]
    %v493 = vld [vmem:[%s8 + $0x2c] sm:$0xf]
    %v494 = vld [vmem:[%s8 + $0x30] sm:$0xf]
    %v495 = vld [vmem:[%s8 + $0x34] sm:$0xf]
    %v496 = vld [vmem:[%s8 + $0x38] sm:$0xf]
    %v497 = vld [vmem:[%s8 + $0x3c] sm:$0xf]
    %v514 = vunpack.c.l.b16 %v482
    %v515 = vunpack.c.l.b16 %v483
    %v516 = vunpack.c.l.b16 %v484
    %v517 = vunpack.c.l.b16 %v485
    %v518 = vunpack.c.l.b16 %v486
    %v519 = vunpack.c.l.b16 %v487
    %v520 = vunpack.c.l.b16 %v488
    %v521 = vunpack.c.l.b16 %v489
    %v522 = vunpack.c.l.b16 %v490
    %v523 = vunpack.c.l.b16 %v491
    %v524 = vunpack.c.l.b16 %v492
    %v525 = vunpack.c.l.b16 %v493
    %v526 = vunpack.c.l.b16 %v494
    %v527 = vunpack.c.l.b16 %v495
    %v528 = vunpack.c.l.b16 %v496
    %v529 = vunpack.c.l.b16 %v497
    %v530 = vpack.c.b16 %v515, %v514
    %v531 = vpack.c.b16 %v517, %v516
    %v532 = vpack.c.b16 %v519, %v518
    %v533 = vpack.c.b16 %v521, %v520
    %v534 = vpack.c.b16 %v523, %v522
    %v535 = vpack.c.b16 %v525, %v524
    %v536 = vpack.c.b16 %v527, %v526
    %v537 = vpack.c.b16 %v529, %v528
    %546 = vmatprep.subr.bf16.mxu0 0
    %547 = vmatpush1.bf16.msra.mxu0 %v537
    %548 = vmatprep.subr.bf16.mxu0 0
    %549 = vmatpush1.bf16.msra.mxu0 %v536
    %550 = vmatprep.subr.bf16.mxu0 0
    %551 = vmatpush1.bf16.msra.mxu0 %v535
    %552 = vmatprep.subr.bf16.mxu0 0
    %553 = vmatpush1.bf16.msra.mxu0 %v534
    %554 = vmatprep.subr.bf16.mxu0 0
    %555 = vmatpush1.bf16.msra.mxu0 %v533
    %556 = vmatprep.subr.bf16.mxu0 0
    %557 = vmatpush1.bf16.msra.mxu0 %v532
    %558 = vmatprep.subr.bf16.mxu0 0
    %559 = vmatpush1.bf16.msra.mxu0 %v531
    %560 = vmatprep.subr.bf16.mxu0 0
    %561 = vmatpush1.bf16.msra.mxu0 %v530
    %562 = vmatprep.subr.bf16.mxu0 0
    %563 = vmatpush2.bf16.msra.mxu0 0
    %564 = vmatprep.subr.bf16.mxu0 0
    %565 = vmatpush2.bf16.msra.mxu0 0
    %566 = vmatprep.subr.bf16.mxu0 0
    %567 = vmatpush2.bf16.msra.mxu0 0
    %568 = vmatprep.subr.bf16.mxu0 0
    %569 = vmatpush2.bf16.msra.mxu0 0
    %570 = vmatprep.subr.bf16.mxu0 0
    %571 = vmatpush2.bf16.msra.mxu0 0
    %572 = vmatprep.subr.bf16.mxu0 0
    %573 = vmatpush2.bf16.msra.mxu0 0
    %574 = vmatprep.subr.bf16.mxu0 0
    %575 = vmatpush2.bf16.msra.mxu0 0
    %576 = vmatprep.subr.bf16.mxu0 0
    %577 = vmatpush2.bf16.msra.mxu0 0
    %578 = vmatprep.mubr.bf16.mxu0 0
    %579 = vmatmul.mubr.bf16.gmra.mxu0 %v481
    %v580 = vpop.f32.mrf.mxu0
    %v581 = vadd.f32 0.0, %v580
    %v582 = vpop.f32.mrf.mxu0
    %v583 = vpop.f32.mrf.mxu0
    %v584 = vadd.f32 0.0, %v583
    %v585 = vpop.f32.mrf.mxu0
    %586 = vdwg.mxu0
    %vm587 = vcmp.gt.f32.partialorder %v581, 0.0
    %vm588 = vcmp.gt.f32.partialorder %v584, 0.0
    %v589 = vmul.f32 %v581, 0.2
    %v590 = vmul.f32 %v584, 0.2
    %v591 = vsel %vm587, %v581, %v589
    %v592 = vsel %vm588, %v584, %v590
    %v593 = vsub.f32 0.0, %v591
    %v594 = vsub.f32 0.0, %v592
    %v595 = vmul.f32 %v593, 1.442695
    %v596 = vpow.pop %v595
    %v597 = vmul.f32 %v594, 1.442695
    %v598 = vpow.pop %v597
    %v599 = vmul.f32 %v596, %v475
    %v600 = vmul.f32 %v598, %v478
    %v601 = vpack.c.bf16 %v600, %v599
    %vm602 = vcmask 130048
    %v604 = vsel %vm602, %v181, 0
    %606 = vmatprep.subr.bf16.mxu0 0
    %607 = vmatpush1.bf16.msra.mxu0 0
    %608 = vmatprep.subr.bf16.mxu0 0
    %609 = vmatpush1.bf16.msra.mxu0 0
    %610 = vmatprep.subr.bf16.mxu0 0
    %611 = vmatpush1.bf16.msra.mxu0 0
    %612 = vmatprep.subr.bf16.mxu0 0
    %613 = vmatpush1.bf16.msra.mxu0 0
    %614 = vmatprep.subr.bf16.mxu0 0
    %615 = vmatpush1.bf16.msra.mxu0 0
    %616 = vmatprep.subr.bf16.mxu0 0
    %617 = vmatpush1.bf16.msra.mxu0 0
    %618 = vmatprep.subr.bf16.mxu0 0
    %619 = vmatpush1.bf16.msra.mxu0 0
    %620 = vmatprep.subr.bf16.mxu0 0
    %621 = vmatpush1.bf16.msra.mxu0 %v601
    %622 = vmatprep.subr.bf16.mxu0 0
    %623 = vmatpush2.bf16.msra.mxu0 0
    %624 = vmatprep.subr.bf16.mxu0 0
    %625 = vmatpush2.bf16.msra.mxu0 0
    %626 = vmatprep.subr.bf16.mxu0 0
    %627 = vmatpush2.bf16.msra.mxu0 0
    %628 = vmatprep.subr.bf16.mxu0 0
    %629 = vmatpush2.bf16.msra.mxu0 0
    %630 = vmatprep.subr.bf16.mxu0 0
    %631 = vmatpush2.bf16.msra.mxu0 0
    %632 = vmatprep.subr.bf16.mxu0 0
    %633 = vmatpush2.bf16.msra.mxu0 0
    %634 = vmatprep.subr.bf16.mxu0 0
    %635 = vmatpush2.bf16.msra.mxu0 0
    %636 = vmatprep.subr.bf16.mxu0 0
    %637 = vmatpush2.bf16.msra.mxu0 0
    %638 = vmatprep.mubr.bf16.mxu0 0
    %639 = vmatmul.mubr.bf16.gmra.mxu0 %v604
    %v640 = vpop.f32.mrf.mxu0
    %v641 = vadd.f32 0.0, %v640
    %v642 = vpop.f32.mrf.mxu0
    %v643 = vpop.f32.mrf.mxu0
    %v644 = vadd.f32 0.0, %v643
    %v645 = vpop.f32.mrf.mxu0
    %646 = vdwg.mxu0
    %v647 = vpack.c.bf16 %v598, %v596
    %648 = vmatprep.subr.bf16.mxu0 0
    %649 = vmatpush1.bf16.msra.mxu0 0
    %650 = vmatprep.subr.bf16.mxu0 0
    %651 = vmatpush1.bf16.msra.mxu0 0
    %652 = vmatprep.subr.bf16.mxu0 0
    %653 = vmatpush1.bf16.msra.mxu0 0
    %654 = vmatprep.subr.bf16.mxu0 0
    %655 = vmatpush1.bf16.msra.mxu0 0
    %656 = vmatprep.subr.bf16.mxu0 0
    %657 = vmatpush1.bf16.msra.mxu0 0
    %658 = vmatprep.subr.bf16.mxu0 0
    %659 = vmatpush1.bf16.msra.mxu0 0
    %660 = vmatprep.subr.bf16.mxu0 0
    %661 = vmatpush1.bf16.msra.mxu0 0
    %662 = vmatprep.subr.bf16.mxu0 0
    %663 = vmatpush1.bf16.msra.mxu0 %v647
    %664 = vmatprep.subr.bf16.mxu0 0
    %665 = vmatpush2.bf16.msra.mxu0 0
    %666 = vmatprep.subr.bf16.mxu0 0
    %667 = vmatpush2.bf16.msra.mxu0 0
    %668 = vmatprep.subr.bf16.mxu0 0
    %669 = vmatpush2.bf16.msra.mxu0 0
    %670 = vmatprep.subr.bf16.mxu0 0
    %671 = vmatpush2.bf16.msra.mxu0 0
    %672 = vmatprep.subr.bf16.mxu0 0
    %673 = vmatpush2.bf16.msra.mxu0 0
    %674 = vmatprep.subr.bf16.mxu0 0
    %675 = vmatpush2.bf16.msra.mxu0 0
    %676 = vmatprep.subr.bf16.mxu0 0
    %677 = vmatpush2.bf16.msra.mxu0 0
    %678 = vmatprep.subr.bf16.mxu0 0
    %679 = vmatpush2.bf16.msra.mxu0 0
    %680 = vmatprep.mubr.bf16.mxu0 0
    %681 = vmatmul.mubr.bf16.gmra.mxu0 %v604
    %v682 = vpop.f32.mrf.mxu0
    %v683 = vadd.f32 1e-12, %v682
    %v684 = vpop.f32.mrf.mxu0
    %v685 = vpop.f32.mrf.mxu0
    %v686 = vadd.f32 1e-12, %v685
    %v687 = vpop.f32.mrf.mxu0
    %688 = vdwg.mxu0
    %v689 = vrcp.pop %v683
    %v690 = vmul.f32 %v641, %v689
    %v691 = vrcp.pop %v686
    %v692 = vmul.f32 %v644, %v691
    %vm693 = vcmp.gt.f32.partialorder %v690, 0.0
    %vm694 = vcmp.gt.f32.partialorder %v692, 0.0
    %v695 = vmul.f32 %v690, 1.442695
    %v696 = vpow.pop %v695
    %v697 = vmul.f32 %v692, 1.442695
    %v698 = vpow.pop %v697
    %v699 = vsub.f32 %v696, 1.0
    %v700 = vsub.f32 %v698, 1.0
    %v701 = vsel %vm693, %v690, %v699
    %v702 = vsel %vm694, %v692, %v700
    %v703 = vpack.c.bf16 %v702, %v701
    %v704 = vld [vmem:[#allocation11] sm:$0xff]
    %v705 = vld [vmem:[#allocation11 + $0x8] sm:$0xff]
    %v706 = vld [vmem:[#allocation11 + $0x10] sm:$0xff]
    %v707 = vld [vmem:[#allocation11 + $0x18] sm:$0xff]
    %v708 = vld [vmem:[#allocation11 + $0x20] sm:$0xff]
    %v709 = vld [vmem:[#allocation11 + $0x28] sm:$0xff]
    %v710 = vld [vmem:[#allocation11 + $0x30] sm:$0xff]
    %v711 = vld [vmem:[#allocation11 + $0x38] sm:$0xff]
    %v712 = vld [vmem:[#allocation11 + $0x40] sm:$0xff]
    %v713 = vld [vmem:[#allocation11 + $0x48] sm:$0xff]
    %v714 = vld [vmem:[#allocation11 + $0x50] sm:$0xff]
    %v715 = vld [vmem:[#allocation11 + $0x58] sm:$0xff]
    %v716 = vld [vmem:[#allocation11 + $0x60] sm:$0xff]
    %v717 = vld [vmem:[#allocation11 + $0x68] sm:$0xff]
    %v718 = vld [vmem:[#allocation11 + $0x70] sm:$0xff]
    %v719 = vld [vmem:[#allocation11 + $0x78] sm:$0xff]
    %v736 = vunpack.c.l.b16 %v704
    %v737 = vunpack.c.h.b16 %v704
    %v738 = vunpack.c.l.b16 %v705
    %v739 = vunpack.c.h.b16 %v705
    %v740 = vunpack.c.l.b16 %v706
    %v741 = vunpack.c.h.b16 %v706
    %v742 = vunpack.c.l.b16 %v707
    %v743 = vunpack.c.h.b16 %v707
    %v744 = vunpack.c.l.b16 %v708
    %v745 = vunpack.c.h.b16 %v708
    %v746 = vunpack.c.l.b16 %v709
    %v747 = vunpack.c.h.b16 %v709
    %v748 = vunpack.c.l.b16 %v710
    %v749 = vunpack.c.h.b16 %v710
    %v750 = vunpack.c.l.b16 %v711
    %v751 = vunpack.c.h.b16 %v711
    %v752 = vunpack.c.l.b16 %v712
    %v753 = vunpack.c.h.b16 %v712
    %v754 = vunpack.c.l.b16 %v713
    %v755 = vunpack.c.h.b16 %v713
    %v756 = vunpack.c.l.b16 %v714
    %v757 = vunpack.c.h.b16 %v714
    %v758 = vunpack.c.l.b16 %v715
    %v759 = vunpack.c.h.b16 %v715
    %v760 = vunpack.c.l.b16 %v716
    %v761 = vunpack.c.h.b16 %v716
    %v762 = vunpack.c.l.b16 %v717
    %v763 = vunpack.c.h.b16 %v717
    %v764 = vunpack.c.l.b16 %v718
    %v765 = vunpack.c.h.b16 %v718
    %v766 = vunpack.c.l.b16 %v719
    %v767 = vunpack.c.h.b16 %v719
    %v768 = vpack.c.b16 %v738, %v736
    %v769 = vpack.c.b16 %v739, %v737
    %v770 = vpack.c.b16 %v742, %v740
    %v771 = vpack.c.b16 %v743, %v741
    %v772 = vpack.c.b16 %v746, %v744
    %v773 = vpack.c.b16 %v747, %v745
    %v774 = vpack.c.b16 %v750, %v748
    %v775 = vpack.c.b16 %v751, %v749
    %v776 = vpack.c.b16 %v754, %v752
    %v777 = vpack.c.b16 %v755, %v753
    %v778 = vpack.c.b16 %v758, %v756
    %v779 = vpack.c.b16 %v759, %v757
    %v780 = vpack.c.b16 %v762, %v760
    %v781 = vpack.c.b16 %v763, %v761
    %v782 = vpack.c.b16 %v766, %v764
    %v783 = vpack.c.b16 %v767, %v765
    %800 = vmatprep.subr.bf16.mxu0 %v783
    %801 = vmatpush1.bf16.msra.mxu0 %v782
    %802 = vmatprep.subr.bf16.mxu0 %v781
    %803 = vmatpush1.bf16.msra.mxu0 %v780
    %804 = vmatprep.subr.bf16.mxu0 %v779
    %805 = vmatpush1.bf16.msra.mxu0 %v778
    %806 = vmatprep.subr.bf16.mxu0 %v777
    %807 = vmatpush1.bf16.msra.mxu0 %v776
    %808 = vmatprep.subr.bf16.mxu0 %v775
    %809 = vmatpush1.bf16.msra.mxu0 %v774
    %810 = vmatprep.subr.bf16.mxu0 %v773
    %811 = vmatpush1.bf16.msra.mxu0 %v772
    %812 = vmatprep.subr.bf16.mxu0 %v771
    %813 = vmatpush1.bf16.msra.mxu0 %v770
    %814 = vmatprep.subr.bf16.mxu0 %v769
    %815 = vmatpush1.bf16.msra.mxu0 %v768
    %816 = vmatprep.subr.bf16.mxu0 0
    %817 = vmatpush2.bf16.msra.mxu0 0
    %818 = vmatprep.subr.bf16.mxu0 0
    %819 = vmatpush2.bf16.msra.mxu0 0
    %820 = vmatprep.subr.bf16.mxu0 0
    %821 = vmatpush2.bf16.msra.mxu0 0
    %822 = vmatprep.subr.bf16.mxu0 0
    %823 = vmatpush2.bf16.msra.mxu0 0
    %824 = vmatprep.subr.bf16.mxu0 0
    %825 = vmatpush2.bf16.msra.mxu0 0
    %826 = vmatprep.subr.bf16.mxu0 0
    %827 = vmatpush2.bf16.msra.mxu0 0
    %828 = vmatprep.subr.bf16.mxu0 0
    %829 = vmatpush2.bf16.msra.mxu0 0
    %830 = vmatprep.subr.bf16.mxu0 0
    %831 = vmatpush2.bf16.msra.mxu0 0
    %832 = vmatprep.mubr.bf16.mxu0 0
    %833 = vmatmul.mubr.bf16.gmra.mxu0 %v703
    %v834 = vpop.f32.mrf.mxu0
    %v835 = vadd.f32 0.0, %v834
    %v836 = vpop.f32.mrf.mxu0
    %v837 = vadd.f32 0.0, %v836
    %v838 = vpop.f32.mrf.mxu0
    %v839 = vadd.f32 0.0, %v838
    %v840 = vpop.f32.mrf.mxu0
    %v841 = vadd.f32 0.0, %v840
    %842 = vdwg.mxu0
    %v843 = vpack.c.bf16 %v425, %v425
    %v844 = vld [vmem:[#allocation12] sm:$0xff]
    %v845 = vld [vmem:[#allocation12 + $0x8] sm:$0xff]
    %v846 = vld [vmem:[#allocation12 + $0x10] sm:$0xff]
    %v847 = vld [vmem:[#allocation12 + $0x18] sm:$0xff]
    %v848 = vld [vmem:[#allocation12 + $0x20] sm:$0xff]
    %v849 = vld [vmem:[#allocation12 + $0x28] sm:$0xff]
    %v850 = vld [vmem:[#allocation12 + $0x30] sm:$0xff]
    %v851 = vld [vmem:[#allocation12 + $0x38] sm:$0xff]
    %v852 = vld [vmem:[#allocation12 + $0x40] sm:$0xff]
    %v853 = vld [vmem:[#allocation12 + $0x48] sm:$0xff]
    %v854 = vld [vmem:[#allocation12 + $0x50] sm:$0xff]
    %v855 = vld [vmem:[#allocation12 + $0x58] sm:$0xff]
    %v856 = vld [vmem:[#allocation12 + $0x60] sm:$0xff]
    %v857 = vld [vmem:[#allocation12 + $0x68] sm:$0xff]
    %v858 = vld [vmem:[#allocation12 + $0x70] sm:$0xff]
    %v859 = vld [vmem:[#allocation12 + $0x78] sm:$0xff]
    %v876 = vunpack.c.l.b16 %v844
    %v877 = vunpack.c.h.b16 %v844
    %v878 = vunpack.c.l.b16 %v845
    %v879 = vunpack.c.h.b16 %v845
    %v880 = vunpack.c.l.b16 %v846
    %v881 = vunpack.c.h.b16 %v846
    %v882 = vunpack.c.l.b16 %v847
    %v883 = vunpack.c.h.b16 %v847
    %v884 = vunpack.c.l.b16 %v848
    %v885 = vunpack.c.h.b16 %v848
    %v886 = vunpack.c.l.b16 %v849
    %v887 = vunpack.c.h.b16 %v849
    %v888 = vunpack.c.l.b16 %v850
    %v889 = vunpack.c.h.b16 %v850
    %v890 = vunpack.c.l.b16 %v851
    %v891 = vunpack.c.h.b16 %v851
    %v892 = vunpack.c.l.b16 %v852
    %v893 = vunpack.c.h.b16 %v852
    %v894 = vunpack.c.l.b16 %v853
    %v895 = vunpack.c.h.b16 %v853
    %v896 = vunpack.c.l.b16 %v854
    %v897 = vunpack.c.h.b16 %v854
    %v898 = vunpack.c.l.b16 %v855
    %v899 = vunpack.c.h.b16 %v855
    %v900 = vunpack.c.l.b16 %v856
    %v901 = vunpack.c.h.b16 %v856
    %v902 = vunpack.c.l.b16 %v857
    %v903 = vunpack.c.h.b16 %v857
    %v904 = vunpack.c.l.b16 %v858
    %v905 = vunpack.c.h.b16 %v858
    %v906 = vunpack.c.l.b16 %v859
    %v907 = vunpack.c.h.b16 %v859
    %v908 = vpack.c.b16 %v878, %v876
    %v909 = vpack.c.b16 %v879, %v877
    %v910 = vpack.c.b16 %v882, %v880
    %v911 = vpack.c.b16 %v883, %v881
    %v912 = vpack.c.b16 %v886, %v884
    %v913 = vpack.c.b16 %v887, %v885
    %v914 = vpack.c.b16 %v890, %v888
    %v915 = vpack.c.b16 %v891, %v889
    %v916 = vpack.c.b16 %v894, %v892
    %v917 = vpack.c.b16 %v895, %v893
    %v918 = vpack.c.b16 %v898, %v896
    %v919 = vpack.c.b16 %v899, %v897
    %v920 = vpack.c.b16 %v902, %v900
    %v921 = vpack.c.b16 %v903, %v901
    %v922 = vpack.c.b16 %v906, %v904
    %v923 = vpack.c.b16 %v907, %v905
    %940 = vmatprep.subr.bf16.mxu0 %v923
    %941 = vmatpush1.bf16.msra.mxu0 %v922
    %942 = vmatprep.subr.bf16.mxu0 %v921
    %943 = vmatpush1.bf16.msra.mxu0 %v920
    %944 = vmatprep.subr.bf16.mxu0 %v919
    %945 = vmatpush1.bf16.msra.mxu0 %v918
    %946 = vmatprep.subr.bf16.mxu0 %v917
    %947 = vmatpush1.bf16.msra.mxu0 %v916
    %948 = vmatprep.subr.bf16.mxu0 %v915
    %949 = vmatpush1.bf16.msra.mxu0 %v914
    %950 = vmatprep.subr.bf16.mxu0 %v913
    %951 = vmatpush1.bf16.msra.mxu0 %v912
    %952 = vmatprep.subr.bf16.mxu0 %v911
    %953 = vmatpush1.bf16.msra.mxu0 %v910
    %954 = vmatprep.subr.bf16.mxu0 %v909
    %955 = vmatpush1.bf16.msra.mxu0 %v908
    %956 = vmatprep.subr.bf16.mxu0 0
    %957 = vmatpush2.bf16.msra.mxu0 0
    %958 = vmatprep.subr.bf16.mxu0 0
    %959 = vmatpush2.bf16.msra.mxu0 0
    %960 = vmatprep.subr.bf16.mxu0 0
    %961 = vmatpush2.bf16.msra.mxu0 0
    %962 = vmatprep.subr.bf16.mxu0 0
    %963 = vmatpush2.bf16.msra.mxu0 0
    %964 = vmatprep.subr.bf16.mxu0 0
    %965 = vmatpush2.bf16.msra.mxu0 0
    %966 = vmatprep.subr.bf16.mxu0 0
    %967 = vmatpush2.bf16.msra.mxu0 0
    %968 = vmatprep.subr.bf16.mxu0 0
    %969 = vmatpush2.bf16.msra.mxu0 0
    %970 = vmatprep.subr.bf16.mxu0 0
    %971 = vmatpush2.bf16.msra.mxu0 0
    %972 = vmatprep.mubr.bf16.mxu0 0
    %973 = vmatmul.mubr.bf16.gmra.mxu0 %v843
    %v974 = vpop.f32.mrf.mxu0
    %v975 = vadd.f32 0.0, %v974
    %v976 = vpop.f32.mrf.mxu0
    %v977 = vadd.f32 0.0, %v976
    %v978 = vpop.f32.mrf.mxu0
    %v979 = vpop.f32.mrf.mxu0
    %980 = vdwg.mxu0
    %v981 = vpack.c.bf16 %v839, %v835
    %v982 = vpack.c.bf16 %v841, %v837
    %v983 = vpack.c.bf16 %v975, %v975
    %v985 = vsel %vm436, %v983, 0
    %987 = vmatprep.subr.bf16.mxu0 0
    %988 = vmatpush1.bf16.msra.mxu0 0
    %989 = vmatprep.subr.bf16.mxu0 0
    %990 = vmatpush1.bf16.msra.mxu0 0
    %991 = vmatprep.subr.bf16.mxu0 0
    %992 = vmatpush1.bf16.msra.mxu0 0
    %993 = vmatprep.subr.bf16.mxu0 0
    %994 = vmatpush1.bf16.msra.mxu0 0
    %995 = vmatprep.subr.bf16.mxu0 0
    %996 = vmatpush1.bf16.msra.mxu0 0
    %997 = vmatprep.subr.bf16.mxu0 0
    %998 = vmatpush1.bf16.msra.mxu0 %v985
    %999 = vmatprep.subr.bf16.mxu0 0
    %1000 = vmatpush1.bf16.msra.mxu0 %v982
    %1001 = vmatprep.subr.bf16.mxu0 0
    %1002 = vmatpush1.bf16.msra.mxu0 %v981
    %1003 = vmatprep.subr.bf16.mxu0 0
    %1004 = vmatpush2.bf16.msra.mxu0 0
    %1005 = vmatprep.subr.bf16.mxu0 0
    %1006 = vmatpush2.bf16.msra.mxu0 0
    %1007 = vmatprep.subr.bf16.mxu0 0
    %1008 = vmatpush2.bf16.msra.mxu0 0
    %1009 = vmatprep.subr.bf16.mxu0 0
    %1010 = vmatpush2.bf16.msra.mxu0 0
    %1011 = vmatprep.subr.bf16.mxu0 0
    %1012 = vmatpush2.bf16.msra.mxu0 0
    %1013 = vmatprep.subr.bf16.mxu0 0
    %1014 = vmatpush2.bf16.msra.mxu0 0
    %1015 = vmatprep.subr.bf16.mxu0 0
    %1016 = vmatpush2.bf16.msra.mxu0 0
    %1017 = vmatprep.subr.bf16.mxu0 0
    %1018 = vmatpush2.bf16.msra.mxu0 0
    %1019 = vmatprep.mubr.bf16.mxu0 0
    %1020 = vmatmul.mubr.bf16.gmra.mxu0 %v434
    %v1021 = vpop.f32.mrf.mxu0
    %v1022 = vadd.f32 0.0, %v1021
    %v1023 = vpop.f32.mrf.mxu0
    %v1024 = vpop.f32.mrf.mxu0
    %v1025 = vadd.f32 0.0, %v1024
    %v1026 = vpop.f32.mrf.mxu0
    %1027 = vdwg.mxu0
    %v1028 = vpack.c.bf16 %v1025, %v1022
    %v1029 = vld [vmem:[#allocation14] sm:$0xf]
    %v1030 = vld [vmem:[#allocation14 + $0x4] sm:$0xf]
    %v1031 = vld [vmem:[#allocation14 + $0x8] sm:$0xf]
    %v1032 = vld [vmem:[#allocation14 + $0xc] sm:$0xf]
    %v1033 = vld [vmem:[#allocation14 + $0x10] sm:$0xf]
    %v1034 = vld [vmem:[#allocation14 + $0x14] sm:$0xf]
    %v1035 = vld [vmem:[#allocation14 + $0x18] sm:$0xf]
    %v1036 = vld [vmem:[#allocation14 + $0x1c] sm:$0xf]
    %v1037 = vld [vmem:[#allocation14 + $0x20] sm:$0xf]
    %v1038 = vld [vmem:[#allocation14 + $0x24] sm:$0xf]
    %v1039 = vld [vmem:[#allocation14 + $0x28] sm:$0xf]
    %v1040 = vld [vmem:[#allocation14 + $0x2c] sm:$0xf]
    %v1041 = vld [vmem:[#allocation14 + $0x30] sm:$0xf]
    %v1042 = vld [vmem:[#allocation14 + $0x34] sm:$0xf]
    %v1043 = vld [vmem:[#allocation14 + $0x38] sm:$0xf]
    %v1044 = vld [vmem:[#allocation14 + $0x3c] sm:$0xf]
    %v1061 = vunpack.c.l.b16 %v1029
    %v1062 = vunpack.c.l.b16 %v1030
    %v1063 = vunpack.c.l.b16 %v1031
    %v1064 = vunpack.c.l.b16 %v1032
    %v1065 = vunpack.c.l.b16 %v1033
    %v1066 = vunpack.c.l.b16 %v1034
    %v1067 = vunpack.c.l.b16 %v1035
    %v1068 = vunpack.c.l.b16 %v1036
    %v1069 = vunpack.c.l.b16 %v1037
    %v1070 = vunpack.c.l.b16 %v1038
    %v1071 = vunpack.c.l.b16 %v1039
    %v1072 = vunpack.c.l.b16 %v1040
    %v1073 = vunpack.c.l.b16 %v1041
    %v1074 = vunpack.c.l.b16 %v1042
    %v1075 = vunpack.c.l.b16 %v1043
    %v1076 = vunpack.c.l.b16 %v1044
    %v1077 = vpack.c.b16 %v1062, %v1061
    %v1078 = vpack.c.b16 %v1064, %v1063
    %v1079 = vpack.c.b16 %v1066, %v1065
    %v1080 = vpack.c.b16 %v1068, %v1067
    %v1081 = vpack.c.b16 %v1070, %v1069
    %v1082 = vpack.c.b16 %v1072, %v1071
    %v1083 = vpack.c.b16 %v1074, %v1073
    %v1084 = vpack.c.b16 %v1076, %v1075
    %1093 = vmatprep.subr.bf16.mxu0 0
    %1094 = vmatpush1.bf16.msra.mxu0 %v1084
    %1095 = vmatprep.subr.bf16.mxu0 0
    %1096 = vmatpush1.bf16.msra.mxu0 %v1083
    %1097 = vmatprep.subr.bf16.mxu0 0
    %1098 = vmatpush1.bf16.msra.mxu0 %v1082
    %1099 = vmatprep.subr.bf16.mxu0 0
    %1100 = vmatpush1.bf16.msra.mxu0 %v1081
    %1101 = vmatprep.subr.bf16.mxu0 0
    %1102 = vmatpush1.bf16.msra.mxu0 %v1080
    %1103 = vmatprep.subr.bf16.mxu0 0
    %1104 = vmatpush1.bf16.msra.mxu0 %v1079
    %1105 = vmatprep.subr.bf16.mxu0 0
    %1106 = vmatpush1.bf16.msra.mxu0 %v1078
    %1107 = vmatprep.subr.bf16.mxu0 0
    %1108 = vmatpush1.bf16.msra.mxu0 %v1077
    %1109 = vmatprep.subr.bf16.mxu0 0
    %1110 = vmatpush2.bf16.msra.mxu0 0
    %1111 = vmatprep.subr.bf16.mxu0 0
    %1112 = vmatpush2.bf16.msra.mxu0 0
    %1113 = vmatprep.subr.bf16.mxu0 0
    %1114 = vmatpush2.bf16.msra.mxu0 0
    %1115 = vmatprep.subr.bf16.mxu0 0
    %1116 = vmatpush2.bf16.msra.mxu0 0
    %1117 = vmatprep.subr.bf16.mxu0 0
    %1118 = vmatpush2.bf16.msra.mxu0 0
    %1119 = vmatprep.subr.bf16.mxu0 0
    %1120 = vmatpush2.bf16.msra.mxu0 0
    %1121 = vmatprep.subr.bf16.mxu0 0
    %1122 = vmatpush2.bf16.msra.mxu0 0
    %1123 = vmatprep.subr.bf16.mxu0 0
    %1124 = vmatpush2.bf16.msra.mxu0 0
    %1125 = vmatprep.mubr.bf16.mxu0 0
    %1126 = vmatmul.mubr.bf16.gmra.mxu0 %v1028
    %v1127 = vpop.f32.mrf.mxu0
    %v1128 = vadd.f32 0.0, %v1127
    %v1129 = vpop.f32.mrf.mxu0
    %v1130 = vpop.f32.mrf.mxu0
    %v1131 = vadd.f32 0.0, %v1130
    %v1132 = vpop.f32.mrf.mxu0
    %1133 = vdwg.mxu0
    %vm1134 = vcmp.gt.f32.partialorder %v1128, 0.0
    %vm1135 = vcmp.gt.f32.partialorder %v1131, 0.0
    %v1136 = vmul.f32 %v1128, 0.2
    %v1137 = vmul.f32 %v1131, 0.2
    %v1138 = vsel %vm1134, %v1128, %v1136
    %v1139 = vsel %vm1135, %v1131, %v1137
    %v1140 = vsub.f32 0.0, %v1138
    %v1141 = vsub.f32 0.0, %v1139
    %v1142 = vmul.f32 %v1140, 1.442695
    %v1143 = vpow.pop %v1142
    %v1144 = vmul.f32 %v1141, 1.442695
    %v1145 = vpow.pop %v1144
    %v1146 = vmul.f32 %v1143, %v1022
    %v1147 = vmul.f32 %v1145, %v1025
    %v1148 = vpack.c.bf16 %v1147, %v1146
    %1149 = vmatprep.subr.bf16.mxu0 0
    %1150 = vmatpush1.bf16.msra.mxu0 0
    %1151 = vmatprep.subr.bf16.mxu0 0
    %1152 = vmatpush1.bf16.msra.mxu0 0
    %1153 = vmatprep.subr.bf16.mxu0 0
    %1154 = vmatpush1.bf16.msra.mxu0 0
    %1155 = vmatprep.subr.bf16.mxu0 0
    %1156 = vmatpush1.bf16.msra.mxu0 0
    %1157 = vmatprep.subr.bf16.mxu0 0
    %1158 = vmatpush1.bf16.msra.mxu0 0
    %1159 = vmatprep.subr.bf16.mxu0 0
    %1160 = vmatpush1.bf16.msra.mxu0 0
    %1161 = vmatprep.subr.bf16.mxu0 0
    %1162 = vmatpush1.bf16.msra.mxu0 0
    %1163 = vmatprep.subr.bf16.mxu0 0
    %1164 = vmatpush1.bf16.msra.mxu0 %v1148
    %1165 = vmatprep.subr.bf16.mxu0 0
    %1166 = vmatpush2.bf16.msra.mxu0 0
    %1167 = vmatprep.subr.bf16.mxu0 0
    %1168 = vmatpush2.bf16.msra.mxu0 0
    %1169 = vmatprep.subr.bf16.mxu0 0
    %1170 = vmatpush2.bf16.msra.mxu0 0
    %1171 = vmatprep.subr.bf16.mxu0 0
    %1172 = vmatpush2.bf16.msra.mxu0 0
    %1173 = vmatprep.subr.bf16.mxu0 0
    %1174 = vmatpush2.bf16.msra.mxu0 0
    %1175 = vmatprep.subr.bf16.mxu0 0
    %1176 = vmatpush2.bf16.msra.mxu0 0
    %1177 = vmatprep.subr.bf16.mxu0 0
    %1178 = vmatpush2.bf16.msra.mxu0 0
    %1179 = vmatprep.subr.bf16.mxu0 0
    %1180 = vmatpush2.bf16.msra.mxu0 0
    %1181 = vmatprep.mubr.bf16.mxu0 0
    %1182 = vmatmul.mubr.bf16.gmra.mxu0 %v604
    %v1183 = vpop.f32.mrf.mxu0
    %v1184 = vadd.f32 0.0, %v1183
    %v1185 = vpop.f32.mrf.mxu0
    %v1186 = vpop.f32.mrf.mxu0
    %v1187 = vadd.f32 0.0, %v1186
    %v1188 = vpop.f32.mrf.mxu0
    %1189 = vdwg.mxu0
    %v1190 = vpack.c.bf16 %v1145, %v1143
    %1191 = vmatprep.subr.bf16.mxu0 0
    %1192 = vmatpush1.bf16.msra.mxu0 0
    %1193 = vmatprep.subr.bf16.mxu0 0
    %1194 = vmatpush1.bf16.msra.mxu0 0
    %1195 = vmatprep.subr.bf16.mxu0 0
    %1196 = vmatpush1.bf16.msra.mxu0 0
    %1197 = vmatprep.subr.bf16.mxu0 0
    %1198 = vmatpush1.bf16.msra.mxu0 0
    %1199 = vmatprep.subr.bf16.mxu0 0
    %1200 = vmatpush1.bf16.msra.mxu0 0
    %1201 = vmatprep.subr.bf16.mxu0 0
    %1202 = vmatpush1.bf16.msra.mxu0 0
    %1203 = vmatprep.subr.bf16.mxu0 0
    %1204 = vmatpush1.bf16.msra.mxu0 0
    %1205 = vmatprep.subr.bf16.mxu0 0
    %1206 = vmatpush1.bf16.msra.mxu0 %v1190
    %1207 = vmatprep.subr.bf16.mxu0 0
    %1208 = vmatpush2.bf16.msra.mxu0 0
    %1209 = vmatprep.subr.bf16.mxu0 0
    %1210 = vmatpush2.bf16.msra.mxu0 0
    %1211 = vmatprep.subr.bf16.mxu0 0
    %1212 = vmatpush2.bf16.msra.mxu0 0
    %1213 = vmatprep.subr.bf16.mxu0 0
    %1214 = vmatpush2.bf16.msra.mxu0 0
    %1215 = vmatprep.subr.bf16.mxu0 0
    %1216 = vmatpush2.bf16.msra.mxu0 0
    %1217 = vmatprep.subr.bf16.mxu0 0
    %1218 = vmatpush2.bf16.msra.mxu0 0
    %1219 = vmatprep.subr.bf16.mxu0 0
    %1220 = vmatpush2.bf16.msra.mxu0 0
    %1221 = vmatprep.subr.bf16.mxu0 0
    %1222 = vmatpush2.bf16.msra.mxu0 0
    %1223 = vmatprep.mubr.bf16.mxu0 0
    %1224 = vmatmul.mubr.bf16.gmra.mxu0 %v604
    %v1225 = vpop.f32.mrf.mxu0
    %v1226 = vadd.f32 1e-12, %v1225
    %v1227 = vpop.f32.mrf.mxu0
    %v1228 = vpop.f32.mrf.mxu0
    %v1229 = vadd.f32 1e-12, %v1228
    %v1230 = vpop.f32.mrf.mxu0
    %1231 = vdwg.mxu0
    %v1232 = vrcp.pop %v1226
    %v1233 = vmul.f32 %v1184, %v1232
    %v1234 = vrcp.pop %v1229
    %v1235 = vmul.f32 %v1187, %v1234
    %vm1236 = vcmp.gt.f32.partialorder %v1233, 0.0
    %vm1237 = vcmp.gt.f32.partialorder %v1235, 0.0
    %v1238 = vmul.f32 %v1233, 1.442695
    %v1239 = vpow.pop %v1238
    %v1240 = vmul.f32 %v1235, 1.442695
    %v1241 = vpow.pop %v1240
    %v1242 = vsub.f32 %v1239, 1.0
    %v1243 = vsub.f32 %v1241, 1.0
    %v1244 = vsel %vm1236, %v1233, %v1242
    %v1245 = vsel %vm1237, %v1235, %v1243
    %v1246 = vld [vmem:[%s16] sm:$0xff]
    %v1247 = vld [vmem:[%s16 + $0x8] sm:$0xff]
    %1249 = vset.pattern.permute.xlu0 0
    %1250 = vperm.xlu0 %1249, %v1246
    %v1251 = vpop.permute.xlu0 %1250
    %1254 = vset.pattern.permute.xlu0 0
    %1255 = vperm.xlu0 %1254, %v1247
    %v1256 = vpop.permute.xlu0 %1255
    %v1258 = vmul.f32 %v1251, %v1244
    %v1259 = vmul.f32 %v1256, %v1245
    %v1260 = vadd.f32 %v354, %v1258
    %v1261 = vadd.f32 %v357, %v1259
    %v1262 = vmul.f32 %v1260, %v1260
    %v1263 = vmul.f32 %v1261, %v1261
    %1264 = vadd.xlane.f32.xlu0 %v1262
    %v1265 = vpop.xlane.xlu0 %1264
    %1266 = vadd.xlane.f32.xlu0 %v1263
    %v1267 = vpop.xlane.xlu0 %1266
    %v1268 = vmax.f32 %v1265, 1e-24
    %v1269 = vmax.f32 %v1267, 1e-24
    %v1270 = vrsqrt.pop %v1268
    %v1271 = vrsqrt.pop %v1269
    %v1272 = vmul.f32 %v1260, %v1270
    %v1273 = vmul.f32 %v1261, %v1271
    %1274 = vst [vmem:[#allocation17] sm:$0xff] %v1272
    %1275 = vst [vmem:[#allocation17 + $0x8] sm:$0xff] %v1273
    %v1276 = vld [vmem:[%s12] sm:$0xf]
    %v1277 = vld [vmem:[%s12 + $0x4] sm:$0xf]
    %v1278 = vpack.c.bf16 %v977, %v977
    %v1279 = vld [vmem:[%s13] sm:$0x1]
    %v1281 = vlaneseq
    %v1282 = vshrl.u32 %v1281, 7
    %v1283 = vsub.s32 0, %v1282
    %v1284 = vrot.slane %v1279, %v1283
    %v1288 = vunpack.c.l.b16 %v1276
    %v1289 = vunpack.c.l.b16 %v1277
    %v1290 = vpack.c.b16 %v1289, %v1288
    %vm1291 = vcmask 64512
    %v1293 = vsel %vm1291, %v1290, 0
    %v1296 = vsel %vm436, %v1278, 0
    %1298 = vmatprep.subr.bf16.mxu0 0
    %1299 = vmatpush1.bf16.msra.mxu0 0
    %1300 = vmatprep.subr.bf16.mxu0 0
    %1301 = vmatpush1.bf16.msra.mxu0 0
    %1302 = vmatprep.subr.bf16.mxu0 0
    %1303 = vmatpush1.bf16.msra.mxu0 0
    %1304 = vmatprep.subr.bf16.mxu0 0
    %1305 = vmatpush1.bf16.msra.mxu0 0
    %1306 = vmatprep.subr.bf16.mxu0 0
    %1307 = vmatpush1.bf16.msra.mxu0 0
    %1308 = vmatprep.subr.bf16.mxu0 0
    %1309 = vmatpush1.bf16.msra.mxu0 0
    %1310 = vmatprep.subr.bf16.mxu0 0
    %1311 = vmatpush1.bf16.msra.mxu0 0
    %1312 = vmatprep.subr.bf16.mxu0 0
    %1313 = vmatpush1.bf16.msra.mxu0 %v1296
    %1314 = vmatprep.subr.bf16.mxu0 0
    %1315 = vmatpush2.bf16.msra.mxu0 0
    %1316 = vmatprep.subr.bf16.mxu0 0
    %1317 = vmatpush2.bf16.msra.mxu0 0
    %1318 = vmatprep.subr.bf16.mxu0 0
    %1319 = vmatpush2.bf16.msra.mxu0 0
    %1320 = vmatprep.subr.bf16.mxu0 0
    %1321 = vmatpush2.bf16.msra.mxu0 0
    %1322 = vmatprep.subr.bf16.mxu0 0
    %1323 = vmatpush2.bf16.msra.mxu0 0
    %1324 = vmatprep.subr.bf16.mxu0 0
    %1325 = vmatpush2.bf16.msra.mxu0 0
    %1326 = vmatprep.subr.bf16.mxu0 0
    %1327 = vmatpush2.bf16.msra.mxu0 0
    %1328 = vmatprep.subr.bf16.mxu0 0
    %1329 = vmatpush2.bf16.msra.mxu0 0
    %1330 = vmatprep.mubr.bf16.mxu0 0
    %1331 = vmatmul.mubr.bf16.gmra.mxu0 %v1293
    %v1332 = vpop.f32.mrf.mxu0
    %v1333 = vadd.f32 %v1284, %v1332
    %v1334 = vpop.f32.mrf.mxu0
    %v1335 = vpop.f32.mrf.mxu0
    %v1336 = vadd.f32 %v1284, %v1335
    %v1337 = vpop.f32.mrf.mxu0
    %1338 = vdwg.mxu0
    %vm1339 = vcmp.gt.f32.partialorder %v1333, 0.0
    %vm1340 = vcmp.gt.f32.partialorder %v1336, 0.0
    %v1341 = vmul.f32 %v1333, 0.25
    %v1342 = vmul.f32 %v1336, 0.25
    %v1343 = vsel %vm1339, %v1333, %v1341
    %v1344 = vsel %vm1340, %v1336, %v1342
    %1345 = vst [vmem:[#allocation18] sm:$0xff] %v1343
    %v1346 = vrot.slane %v425, 4
    %v1347 = vadd.f32 %v425, %v1346
    %v1348 = vrot.slane %v1347, 2
    %v1349 = vadd.f32 %v1347, %v1348
    %v1350 = vrot.slane %v1349, 1
    %v1351 = vadd.f32 %v1349, %v1350
    %v1352 = vrcp.pop 8.0
    %v1353 = vmul.f32 %v1351, %v1352
    %v1354 = vsub.f32 0.0, %v1353
    %v1355 = vmul.f32 %v1354, 1.442695
    %v1356 = vpow.pop %v1355
    %v1357 = vadd.f32 %v1356, 1.0
    %v1358 = vrcp.pop %v1357
    %v1359 = vmul.f32 1.0, %v1358
    %v1360 = vpack.c.bf16 %v1359, %v1359
    %v1361 = vld [vmem:[#allocation15] sm:$0xf]
    %v1362 = vld [vmem:[#allocation15 + $0x4] sm:$0xf]
    %v1363 = vld [vmem:[#allocation15 + $0x8] sm:$0xf]
    %v1364 = vld [vmem:[#allocation15 + $0xc] sm:$0xf]
    %v1365 = vld [vmem:[#allocation15 + $0x10] sm:$0xf]
    %v1366 = vld [vmem:[#allocation15 + $0x14] sm:$0xf]
    %v1367 = vld [vmem:[#allocation15 + $0x18] sm:$0xf]
    %v1368 = vld [vmem:[#allocation15 + $0x1c] sm:$0xf]
    %v1369 = vld [vmem:[#allocation15 + $0x20] sm:$0xf]
    %v1370 = vld [vmem:[#allocation15 + $0x24] sm:$0xf]
    %v1371 = vld [vmem:[#allocation15 + $0x28] sm:$0xf]
    %v1372 = vld [vmem:[#allocation15 + $0x2c] sm:$0xf]
    %v1373 = vld [vmem:[#allocation15 + $0x30] sm:$0xf]
    %v1374 = vld [vmem:[#allocation15 + $0x34] sm:$0xf]
    %v1375 = vld [vmem:[#allocation15 + $0x38] sm:$0xf]
    %v1376 = vld [vmem:[#allocation15 + $0x3c] sm:$0xf]
    %v1393 = vunpack.c.l.b16 %v1361
    %v1394 = vunpack.c.l.b16 %v1362
    %v1395 = vunpack.c.l.b16 %v1363
    %v1396 = vunpack.c.l.b16 %v1364
    %v1397 = vunpack.c.l.b16 %v1365
    %v1398 = vunpack.c.l.b16 %v1366
    %v1399 = vunpack.c.l.b16 %v1367
    %v1400 = vunpack.c.l.b16 %v1368
    %v1401 = vunpack.c.l.b16 %v1369
    %v1402 = vunpack.c.l.b16 %v1370
    %v1403 = vunpack.c.l.b16 %v1371
    %v1404 = vunpack.c.l.b16 %v1372
    %v1405 = vunpack.c.l.b16 %v1373
    %v1406 = vunpack.c.l.b16 %v1374
    %v1407 = vunpack.c.l.b16 %v1375
    %v1408 = vunpack.c.l.b16 %v1376
    %v1409 = vpack.c.b16 %v1394, %v1393
    %v1410 = vpack.c.b16 %v1396, %v1395
    %v1411 = vpack.c.b16 %v1398, %v1397
    %v1412 = vpack.c.b16 %v1400, %v1399
    %v1413 = vpack.c.b16 %v1402, %v1401
    %v1414 = vpack.c.b16 %v1404, %v1403
    %v1415 = vpack.c.b16 %v1406, %v1405
    %v1416 = vpack.c.b16 %v1408, %v1407
    %1425 = vmatprep.subr.bf16.mxu0 0
    %1426 = vmatpush1.bf16.msra.mxu0 %v1416
    %1427 = vmatprep.subr.bf16.mxu0 0
    %1428 = vmatpush1.bf16.msra.mxu0 %v1415
    %1429 = vmatprep.subr.bf16.mxu0 0
    %1430 = vmatpush1.bf16.msra.mxu0 %v1414
    %1431 = vmatprep.subr.bf16.mxu0 0
    %1432 = vmatpush1.bf16.msra.mxu0 %v1413
    %1433 = vmatprep.subr.bf16.mxu0 0
    %1434 = vmatpush1.bf16.msra.mxu0 %v1412
    %1435 = vmatprep.subr.bf16.mxu0 0
    %1436 = vmatpush1.bf16.msra.mxu0 %v1411
    %1437 = vmatprep.subr.bf16.mxu0 0
    %1438 = vmatpush1.bf16.msra.mxu0 %v1410
    %1439 = vmatprep.subr.bf16.mxu0 0
    %1440 = vmatpush1.bf16.msra.mxu0 %v1409
    %1441 = vmatprep.subr.bf16.mxu0 0
    %1442 = vmatpush2.bf16.msra.mxu0 0
    %1443 = vmatprep.subr.bf16.mxu0 0
    %1444 = vmatpush2.bf16.msra.mxu0 0
    %1445 = vmatprep.subr.bf16.mxu0 0
    %1446 = vmatpush2.bf16.msra.mxu0 0
    %1447 = vmatprep.subr.bf16.mxu0 0
    %1448 = vmatpush2.bf16.msra.mxu0 0
    %1449 = vmatprep.subr.bf16.mxu0 0
    %1450 = vmatpush2.bf16.msra.mxu0 0
    %1451 = vmatprep.subr.bf16.mxu0 0
    %1452 = vmatpush2.bf16.msra.mxu0 0
    %1453 = vmatprep.subr.bf16.mxu0 0
    %1454 = vmatpush2.bf16.msra.mxu0 0
    %1455 = vmatprep.subr.bf16.mxu0 0
    %1456 = vmatpush2.bf16.msra.mxu0 0
    %1457 = vmatprep.mubr.bf16.mxu0 0
    %1458 = vmatmul.mubr.bf16.gmra.mxu0 %v1360
    %v1459 = vpop.f32.mrf.mxu0
    %v1460 = vadd.f32 0.0, %v1459
    %v1461 = vpop.f32.mrf.mxu0
    %v1462 = vpop.f32.mrf.mxu0
    %v1463 = vpop.f32.mrf.mxu0
    %1464 = vdwg.mxu0
    %v1465 = vlaneseq
    %v1466 = vshrl.u32 %v1465, 7
    %v1467 = vsub.s32 0, %v1466
    %v1468 = vrot.slane %v1460, %v1467
    %v1469 = vmul.f32 %v1343, %v1468
    %v1470 = vmul.f32 %v1344, %v1468
    %1471 = vadd.xlane.f32.xlu0 %v1469
    %v1472 = vpop.xlane.xlu0 %1471
    %1473 = vadd.xlane.f32.xlu0 %v1470
    %v1474 = vpop.xlane.xlu0 %1473
    %v1475 = vld [vmem:[#allocation2] sm:$0x1]
    %v1477 = vlaneseq
    %v1478 = vshrl.u32 %v1477, 7
    %v1479 = vsub.s32 0, %v1478
    %v1480 = vrot.slane %v1475, %v1479
    %v1482 = vadd.f32 %v1472, %v1480
    %v1483 = vadd.f32 %v1474, %v1480
    %vm1484 = vcmask 7168
    %1485 = vst.msk [vmem:[%s19] sm:$0xff] %vm1484, %v1482
    %1486 = vst.msk [vmem:[%s19 + $0x8] sm:$0xff] %vm1484, %v1483
    // Predicated region
    $region102: #{tpu_custom_call.1} parent=1 // pred_check
      _
    $region103: #{tpu_custom_call.1} parent=1 // pred_check_branch
      %1488 = sbr.rel (0) target = $region105
    $region104: #{tpu_custom_call.1} parent=1 // pred_region
      %s1490 = ssub.s32 256, 256
      %1491 = vsyncadd [#allocation5], %s1490
      %s1492 = sshll.u32 [#allocation17], 4
      %s1493 = int_to_ptr.vmem [resolvable:$true] %s1492
      %1498 = dma.vmem_to_hbm [thread:$0]  %s1493, 256, %s17, [#allocation5], 128, 128, 8
    $region105: #{tpu_custom_call.1} parent=1 // pred_fallthru
      _
    // Predicated region
    $region106: #{tpu_custom_call.1} parent=1 // pred_check
      _
    $region107: #{tpu_custom_call.1} parent=1 // pred_check_branch
      %1500 = sbr.rel (0) target = $region109
    $region108: #{tpu_custom_call.1} parent=1 // pred_region
      %s1502 = ssub.s32 128, 128
      %1503 = vsyncadd [#allocation19], %s1502
      %s1505 = sshll.u32 [#allocation18], 4
      %s1506 = int_to_ptr.vmem [resolvable:$true] %s1505
      %1508 = dma.vmem_to_hbm [thread:$0]  %s1506, 128, %s18, [#allocation19]
    $region109: #{tpu_custom_call.1} parent=1 // pred_fallthru
      _
    // Predicated region
    $region110: #{tpu_custom_call.1} parent=1 // pred_check
      _
    $region111: #{tpu_custom_call.1} parent=1 // pred_check_branch
      %1510 = sbr.rel (0) target = $region113
    $region112: #{tpu_custom_call.1} parent=1 // pred_region
      _
    $region113: #{tpu_custom_call.1} parent=1 // pred_fallthru
      _
    // Predicated region
    $region114: #{tpu_custom_call.1} parent=1 // pred_check
      _
    $region115: #{tpu_custom_call.1} parent=1 // pred_check_branch
      %1512 = sbr.rel (0) target = $region117
    $region116: #{tpu_custom_call.1} parent=1 // pred_region
      %1513 = dma.done [#allocation5], 256
    $region117: #{tpu_custom_call.1} parent=1 // pred_fallthru
      _
    // Predicated region
    $region118: #{tpu_custom_call.1} parent=1 // pred_check
      _
    $region119: #{tpu_custom_call.1} parent=1 // pred_check_branch
      %1515 = sbr.rel (0) target = $region121
    $region120: #{tpu_custom_call.1} parent=1 // pred_region
      %1516 = dma.done [#allocation19], 128
    $region121: #{tpu_custom_call.1} parent=1 // pred_fallthru
      _
    // Predicated region
    $region122: #{tpu_custom_call.1} parent=1 // pred_check
      _
    $region123: #{tpu_custom_call.1} parent=1 // pred_check_branch
      %1518 = sbr.rel (0) target = $region125
    $region124: #{tpu_custom_call.1} parent=1 // pred_region
      _
    $region125: #{tpu_custom_call.1} parent=1 // pred_fallthru
      _
    %1519 = vsyncpa [#allocation4], 1
    %1520 = vsyncpa [#allocation7], 1
    %1521 = vsyncpa [#allocation10], 1
    %1522 = vsyncpa [#allocation13], 1
    %1523 = vsyncpa [#allocation16], 1
    %1524 = vsyncpa [#allocation5], 1
    %1525 = vsyncpa [#allocation19], 1

</llo_original>
